<compile_context>
chip_gen: v5e
topology: v5e:2x2
jax: 0.10.0
libtpu: 0.0.40
codegen_flags: <defaults>
</compile_context>

<pallas_src>
import functools

import jax
import jax.numpy as jnp
import numpy as np
from jax.experimental import pallas as pl
from jax.experimental.pallas import tpu as pltpu

EPS = 1e-5
COMPUTE_DTYPE = jnp.bfloat16   # MXU input dtype; accumulation is always f32
LANE = 128                     # lane width (output channels padded to this)
TILE_L_MAX = 256               # output rows per grid step (review: 256-512)


def _round_up(x, m):
    return (x + m - 1) // m * m


# ----------------------------------------------------------------------------
# Pallas kernels
# ----------------------------------------------------------------------------
def _conv_bn_relu_kernel(x_ref, w_ref, shift_ref, o_ref, *, taps, tile_l):
    """Stride-1 `taps`-tap conv + folded BN + ReLU for one (batch, L-tile) cell.

    x_ref:     (1, G, Cin_g)          grouped input, full length for this batch item
    w_ref:     (taps, Cin_g, Cout_p)  BN-scale-folded weights (bf16)
    shift_ref: (1, Cout_p)            BN shift (f32)
    o_ref:     (1, tile_l, Cout_p)
    """
    j = pl.program_id(1)
    r0 = pl.multiple_of(j * tile_l, tile_l)      # aligned dynamic window start
    cout_p = o_ref.shape[-1]

    # One aligned load of the (tile_l + taps - 1)-row window; per-tap views are
    # static slices of the (unpacked, f32) value -> no unaligned packed-dtype
    # sublane shifts needed.
    win = x_ref[0, pl.ds(r0, tile_l + taps - 1), :].astype(jnp.float32)

    acc = jnp.zeros((tile_l, cout_p), jnp.float32)
    for d in range(taps):                         # static, unrolled (taps <= 3)
        xs = win[d:d + tile_l, :].astype(COMPUTE_DTYPE)
        acc = acc + jnp.dot(xs, w_ref[d], preferred_element_type=jnp.float32)

    y = acc + shift_ref[...]
    o_ref[0] = jnp.maximum(y, 0.0).astype(o_ref.dtype)


def _maxpool3_s2_kernel(x_ref, o_ref, *, c, tile_l):
    """MaxPool1d(k=3, s=2) on pair-grouped channels-last input.

    x_ref: (1, G, 2*c)   pair-grouped input (x[2g] | x[2g+1] on the lane axis)
    o_ref: (1, tile_l, c)
    """
    j = pl.program_id(1)
    r0 = pl.multiple_of(j * tile_l, tile_l)
    win = x_ref[0, pl.ds(r0, tile_l + 1), :]      # (tile_l + 1, 2c), read x once
    a = win[:tile_l, 0:c]                         # x[2i]
    b = win[:tile_l, c:2 * c]                     # x[2i + 1]
    d = win[1:tile_l + 1, 0:c]                    # x[2i + 2]
    o_ref[0] = jnp.maximum(jnp.maximum(a, b), d)


# ----------------------------------------------------------------------------
# Wrappers (plain JAX glue: padding, free reshapes, parameter folding)
# ----------------------------------------------------------------------------
def conv1d_bn_relu(x_nlc, params, *, stride=1, padding=0, out_dtype=jnp.float32):
    """BasicConv1d (Conv1d bias=False + BN(eval) + ReLU) on channels-last input.

    x_nlc: (N, L, Cin_arr) with Cin_arr >= conv Cin (extra channels are zero).
    Returns (N, L_out, Cout_pad) with Cout_pad = round_up(Cout, 128); channels
    >= Cout are zeros.
    """
    n, l, cin_arr = x_nlc.shape
    w = params["w"]                              # (Cout, Cin, K)
    cout, cin, k = w.shape
    assert cin_arr >= cin

    l_out = (l + 2 * padding - k) // stride + 1
    tile_l = min(TILE_L_MAX, _round_up(l_out, 16))   # 16: bf16 sublane packing
    l_out_pad = _round_up(l_out, tile_l)
    taps = (k - 1) // stride + 1                 # stride-s conv -> stride-1 taps
    cin_g = stride * cin_arr                     # space-to-depth channel count
    cout_pad = _round_up(cout, LANE)             # lane-dense output channels

    # ---- fold BN scale into weights, BN shift into a bias row; pad channels -
    scale = params["gamma"] / jnp.sqrt(params["var"] + EPS)
    shift = params["beta"] - params["mean"] * scale
    wf = w * scale[:, None, None]                                  # (Cout,Cin,K)
    wf = jnp.pad(wf, ((0, cout_pad - cout), (0, cin_arr - cin), (0, 0)))
    shift = jnp.pad(shift, (0, cout_pad - cout))
    # regroup taps: stride-s K-tap conv == stride-1 `taps`-tap conv over s*Cin
    wg = jnp.zeros((taps, cin_g, cout_pad), jnp.float32)
    for t in range(k):
        d, r = t // stride, t % stride
        wg = wg.at[d, r * cin_arr:(r + 1) * cin_arr, :].set(wf[:, :, t].T)
    wg = wg.astype(COMPUTE_DTYPE)
    shift = shift.reshape(1, cout_pad).astype(jnp.float32)

    # ---- pad + free (contiguous) space-to-depth regroup of the activations --
    groups = l_out_pad + taps - 1
    l_needed = groups * stride
    pad_r = max(l_needed - padding - l, 0)
    xg = jnp.pad(x_nlc, ((0, 0), (padding, pad_r), (0, 0)))[:, :l_needed, :]
    xg = xg.reshape(n, groups, cin_g)            # free reshape in NLC layout

    cost = pl.CostEstimate(
        flops=2 * n * l_out_pad * taps * cin_g * cout_pad,
        transcendentals=0,
        bytes_accessed=int(xg.size * xg.dtype.itemsize
                           + wg.size * wg.dtype.itemsize
                           + shift.size * 4
                           + n * l_out_pad * cout_pad
                           * jnp.dtype(out_dtype).itemsize),
    )

    out = pl.pallas_call(
        functools.partial(_conv_bn_relu_kernel, taps=taps, tile_l=tile_l),
        out_shape=jax.ShapeDtypeStruct((n, l_out_pad, cout_pad), out_dtype),
        grid=(n, l_out_pad // tile_l),
        in_specs=[
            # full grouped length of one batch item; re-used across L-tiles
            pl.BlockSpec((1, groups, cin_g), lambda i, j: (i, 0, 0)),
            pl.BlockSpec((taps, cin_g, cout_pad), lambda i, j: (0, 0, 0)),
            pl.BlockSpec((1, cout_pad), lambda i, j: (0, 0)),
        ],
        out_specs=pl.BlockSpec((1, tile_l, cout_pad), lambda i, j: (i, j, 0)),
        compiler_params=pltpu.CompilerParams(
            dimension_semantics=("parallel", "parallel")),
        cost_estimate=cost,
    )(xg, wg, shift)

    return out[:, :l_out, :]


def maxpool1d_k3_s2(x_nlc):
    """MaxPool1d(kernel_size=3, stride=2), valid padding, channels-last."""
    n, l, c = x_nlc.shape
    l_out = (l - 3) // 2 + 1
    tile_l = min(TILE_L_MAX, _round_up(l_out, 8))
    l_out_pad = _round_up(l_out, tile_l)
    groups = l_out_pad + 1
    l_needed = 2 * groups
    pad_r = max(l_needed - l, 0)
    xg = jnp.pad(x_nlc, ((0, 0), (0, pad_r), (0, 0)))[:, :l_needed, :]
    xg = xg.reshape(n, groups, 2 * c)            # free pair-grouping reshape

    out = pl.pallas_call(
        functools.partial(_maxpool3_s2_kernel, c=c, tile_l=tile_l),
        out_shape=jax.ShapeDtypeStruct((n, l_out_pad, c), x_nlc.dtype),
        grid=(n, l_out_pad // tile_l),
        in_specs=[pl.BlockSpec((1, groups, 2 * c), lambda i, j: (i, 0, 0))],
        out_specs=pl.BlockSpec((1, tile_l, c), lambda i, j: (i, j, 0)),
        compiler_params=pltpu.CompilerParams(
            dimension_semantics=("parallel", "parallel")),
    )(xg)
    return out[:, :l_out, :]


# ----------------------------------------------------------------------------
# InceptionB
# ----------------------------------------------------------------------------
def init_basic_conv1d(key, cin, cout, k):
    w = jax.random.normal(key, (cout, cin, k), jnp.float32) / jnp.sqrt(cin * k)
    return {
        "w": w,
        "gamma": jnp.ones((cout,), jnp.float32),
        "beta": jnp.zeros((cout,), jnp.float32),
        "mean": jnp.zeros((cout,), jnp.float32),
        "var": jnp.ones((cout,), jnp.float32),
    }


def init_inception_b(key, input_channels):
    k0, k1, k2, k3 = jax.random.split(key, 4)
    return {
        "branch3x3": init_basic_conv1d(k0, input_channels, 384, 3),
        "stack0": init_basic_conv1d(k1, input_channels, 64, 1),
        "stack1": init_basic_conv1d(k2, 64, 96, 3),
        "stack2": init_basic_conv1d(k3, 96, 96, 3),
    }


def inception_b_forward(params, x):
    # x: (N, C, L) — PyTorch NCL layout.  One transpose in, one transpose out.
    x_nlc = jnp.transpose(x, (0, 2, 1))                  # (N, L, C)
    x_bf = x_nlc.astype(COMPUTE_DTYPE)

    # branch 1: 3x3 conv, stride 2
    b1 = conv1d_bn_relu(x_bf, params["branch3x3"], stride=2, padding=0,
                        out_dtype=jnp.float32)[..., :384]

    # branch 2: 1x1 -> 3x3(pad 1) -> 3x3(stride 2); intermediates stay
    # channels-last, lane-padded (128) and bf16, so they chain with no relayout.
    y = conv1d_bn_relu(x_bf, params["stack0"], stride=1, padding=0,
                       out_dtype=COMPUTE_DTYPE)          # (N, L, 128)
    y = conv1d_bn_relu(y, params["stack1"], stride=1, padding=1,
                       out_dtype=COMPUTE_DTYPE)          # (N, L, 128)
    b2 = conv1d_bn_relu(y, params["stack2"], stride=2, padding=0,
                        out_dtype=jnp.float32)[..., :96]

    # branch 3: max pool k=3 s=2, single pass over x
    b3 = maxpool1d_k3_s2(x_nlc)                          # (N, L_out, C)

    out_nlc = jnp.concatenate([b1, b2, b3], axis=-1)     # (N, L_out, 384+96+C)
    return jnp.transpose(out_nlc, (0, 2, 1))             # back to NCL once


# ----------------------------------------------------------------------------
# Pure-JAX reference (f32) for correctness check
# ----------------------------------------------------------------------------
def _ref_basic_conv(x, p, stride, padding):
    y = jax.lax.conv_general_dilated(
        x, p["w"], (stride,), [(padding, padding)],
        dimension_numbers=("NCH", "OIH", "NCH"),
    )
    s = p["gamma"] / jnp.sqrt(p["var"] + EPS)
    sh = p["beta"] - p["mean"] * s
    return jnp.maximum(y * s[None, :, None] + sh[None, :, None], 0.0)


def _ref_forward(params, x):
    b1 = _ref_basic_conv(x, params["branch3x3"], 2, 0)
    y = _ref_basic_conv(x, params["stack0"], 1, 0)
    y = _ref_basic_conv(y, params["stack1"], 1, 1)
    b2 = _ref_basic_conv(y, params["stack2"], 2, 0)
    b3 = jax.lax.reduce_window(
        x, -jnp.inf, jax.lax.max, (1, 1, 3), (1, 1, 2), "VALID"
    )
    return jnp.concatenate([b1, b2, b3], axis=1)


# ----------------------------------------------------------------------------
if __name__ == "__main__":
    key = jax.random.PRNGKey(0)
    kx, kp = jax.random.split(key)

    N, C_IN, L = 2, 4, 16
    x = jax.random.normal(kx, (N, C_IN, L), jnp.float32)
    params = init_inception_b(kp, C_IN)

    fwd = jax.jit(inception_b_forward)
    out = jax.block_until_ready(fwd(params, x))

    # shape check: channels = 384 + 96 + C_in, length = (L - 3)//2 + 1
    expected_shape = (N, 384 + 96 + C_IN, (L - 3) // 2 + 1)
    assert out.shape == expected_shape, (out.shape, expected_shape)

    ref = jax.block_until_ready(_ref_forward(params, x))
    # tolerance chosen for bf16 MXU inputs with f32 accumulation
    np.testing.assert_allclose(np.asarray(out, dtype=np.float32),
                               np.asarray(ref), rtol=2e-2, atol=2e-2)

    print("KERNEL_OK")
</pallas_src>

<mosaic_0001>
module attributes {stable_mosaic.version = 11 : i64} {
  func.func @_conv_bn_relu_kernel(%arg0: i32, %arg1: i32, %arg2: memref<1x16x4xbf16, #tpu.memory_space<vmem>>, %arg3: memref<1x4x128xbf16, #tpu.memory_space<vmem>>, %arg4: memref<1x128xf32, #tpu.memory_space<vmem>>, %arg5: memref<1x16x128xbf16, #tpu.memory_space<vmem>>) attributes {dimension_semantics = [#tpu.dimension_semantics<parallel>, #tpu.dimension_semantics<parallel>], iteration_bounds = array<i64: 2, 1>, scalar_prefetch = 0 : i64, scratch_operands = 0 : i64, tpu.core_type = #tpu.core_type<tc>, window_params = [{transform_indices = @transform_0, window_bounds = array<i64: 1, 16, 4>}, {pipeline_mode = #tpu.pipeline_mode<synchronous>, transform_indices = @transform_1, window_bounds = array<i64: 1, 4, 128>}, {pipeline_mode = #tpu.pipeline_mode<synchronous>, transform_indices = @transform_2, window_bounds = array<i64: 1, 128>}, {transform_indices = @transform_3, window_bounds = array<i64: 1, 16, 128>}]} {
    %c16_i32 = arith.constant 16 : i32
    %0 = arith.muli %arg1, %c16_i32 : i32
    %1 = tpu.assume_multiple %0, 16 : i32
    %c0 = arith.constant 0 : index
    %2 = arith.index_cast %1 : i32 to index
    %c0_0 = arith.constant 0 : index
    %3 = vector.load %arg2[%c0, %2, %c0_0] : memref<1x16x4xbf16, #tpu.memory_space<vmem>>, vector<1x16x4xbf16>
    %4 = vector.shape_cast %3 : vector<1x16x4xbf16> to vector<16x4xbf16>
    %5 = arith.extf %4 : vector<16x4xbf16> to vector<16x4xf32>
    %cst = arith.constant 0.000000e+00 : f32
    %6 = vector.broadcast %cst : f32 to vector<16x128xf32>
    %7 = arith.truncf %5 : vector<16x4xf32> to vector<16x4xbf16>
    %c0_1 = arith.constant 0 : index
    %c0_2 = arith.constant 0 : index
    %c0_3 = arith.constant 0 : index
    %8 = vector.load %arg3[%c0_1, %c0_2, %c0_3] : memref<1x4x128xbf16, #tpu.memory_space<vmem>>, vector<1x4x128xbf16>
    %9 = vector.shape_cast %8 : vector<1x4x128xbf16> to vector<4x128xbf16>
    %cst_4 = arith.constant dense<0.000000e+00> : vector<16x128xf32>
    %10 = tpu.matmul %7, %9, %cst_4 {dimension_numbers = #tpu.dot_dimension_numbers<[1], [0], [0], [1], [0, 0, 1, 1], [], []>} : vector<16x4xbf16>, vector<4x128xbf16>, vector<16x128xf32> -> vector<16x128xf32>
    %11 = arith.addf %6, %10 : vector<16x128xf32>
    %c0_5 = arith.constant 0 : index
    %c0_6 = arith.constant 0 : index
    %12 = vector.load %arg4[%c0_5, %c0_6] : memref<1x128xf32, #tpu.memory_space<vmem>>, vector<1x128xf32>
    %13 = vector.broadcast %12 : vector<1x128xf32> to vector<16x128xf32>
    %14 = arith.addf %11, %13 : vector<16x128xf32>
    %cst_7 = arith.constant 0.000000e+00 : f32
    %15 = vector.broadcast %cst_7 : f32 to vector<16x128xf32>
    %16 = arith.maximumf %14, %15 : vector<16x128xf32>
    %17 = arith.truncf %16 : vector<16x128xf32> to vector<16x128xbf16>
    %c0_8 = arith.constant 0 : index
    %c0_9 = arith.constant 0 : index
    %c0_10 = arith.constant 0 : index
    %18 = vector.load %arg5[%c0_8, %c0_9, %c0_10] : memref<1x16x128xbf16, #tpu.memory_space<vmem>>, vector<1x16x128xbf16>
    %19 = vector.shape_cast %18 : vector<1x16x128xbf16> to vector<16x128xbf16>
    %20 = vector.shape_cast %17 : vector<16x128xbf16> to vector<1x16x128xbf16>
    tpu.vector_store %arg5[%c0_8, %c0_9, %c0_10], %20 {strides = array<i32>} : memref<1x16x128xbf16, #tpu.memory_space<vmem>>, vector<1x16x128xbf16>,
    return
  }
  func.func @transform_0(%arg0: i32, %arg1: i32) -> (i32, i32, i32) {
    %c0_i32 = arith.constant 0 : i32
    %c0_i32_0 = arith.constant 0 : i32
    %c0_i32_1 = arith.constant 0 : i32
    return %arg0, %c0_i32, %c0_i32_0 : i32, i32, i32
  }
  func.func @transform_1(%arg0: i32, %arg1: i32) -> (i32, i32, i32) {
    %c0_i32 = arith.constant 0 : i32
    %c0_i32_0 = arith.constant 0 : i32
    %c0_i32_1 = arith.constant 0 : i32
    %c0_i32_2 = arith.constant 0 : i32
    return %c0_i32, %c0_i32_0, %c0_i32_1 : i32, i32, i32
  }
  func.func @transform_2(%arg0: i32, %arg1: i32) -> (i32, i32) {
    %c0_i32 = arith.constant 0 : i32
    %c0_i32_0 = arith.constant 0 : i32
    %c0_i32_1 = arith.constant 0 : i32
    return %c0_i32, %c0_i32_0 : i32, i32
  }
  func.func @transform_3(%arg0: i32, %arg1: i32) -> (i32, i32, i32) {
    %c0_i32 = arith.constant 0 : i32
    %c0_i32_0 = arith.constant 0 : i32
    return %arg0, %arg1, %c0_i32 : i32, i32, i32
  }
}

module attributes {stable_mosaic.version = 11 : i64} {
  func.func @_conv_bn_relu_kernel(%arg0: i32, %arg1: i32, %arg2: memref<1x18x128xbf16, #tpu.memory_space<vmem>>, %arg3: memref<3x128x128xbf16, #tpu.memory_space<vmem>>, %arg4: memref<1x128xf32, #tpu.memory_space<vmem>>, %arg5: memref<1x16x128xbf16, #tpu.memory_space<vmem>>) attributes {dimension_semantics = [#tpu.dimension_semantics<parallel>, #tpu.dimension_semantics<parallel>], iteration_bounds = array<i64: 2, 1>, scalar_prefetch = 0 : i64, scratch_operands = 0 : i64, tpu.core_type = #tpu.core_type<tc>, window_params = [{transform_indices = @transform_0, window_bounds = array<i64: 1, 18, 128>}, {pipeline_mode = #tpu.pipeline_mode<synchronous>, transform_indices = @transform_1, window_bounds = array<i64: 3, 128, 128>}, {pipeline_mode = #tpu.pipeline_mode<synchronous>, transform_indices = @transform_2, window_bounds = array<i64: 1, 128>}, {transform_indices = @transform_3, window_bounds = array<i64: 1, 16, 128>}]} {
    %c16_i32 = arith.constant 16 : i32
    %0 = arith.muli %arg1, %c16_i32 : i32
    %1 = tpu.assume_multiple %0, 16 : i32
    %c0 = arith.constant 0 : index
    %2 = arith.index_cast %1 : i32 to index
    %c0_0 = arith.constant 0 : index
    %3 = vector.load %arg2[%c0, %2, %c0_0] : memref<1x18x128xbf16, #tpu.memory_space<vmem>>, vector<1x18x128xbf16>
    %4 = vector.shape_cast %3 : vector<1x18x128xbf16> to vector<18x128xbf16>
    %5 = arith.extf %4 : vector<18x128xbf16> to vector<18x128xf32>
    %cst = arith.constant 0.000000e+00 : f32
    %6 = vector.broadcast %cst : f32 to vector<16x128xf32>
    %7 = vector.extract_strided_slice %5 {offsets = [0, 0], sizes = [16, 128], strides = [1, 1]} : vector<18x128xf32> to vector<16x128xf32>
    %8 = arith.truncf %7 : vector<16x128xf32> to vector<16x128xbf16>
    %c0_1 = arith.constant 0 : index
    %c0_2 = arith.constant 0 : index
    %c0_3 = arith.constant 0 : index
    %9 = vector.load %arg3[%c0_1, %c0_2, %c0_3] : memref<3x128x128xbf16, #tpu.memory_space<vmem>>, vector<1x128x128xbf16>
    %10 = vector.shape_cast %9 : vector<1x128x128xbf16> to vector<128x128xbf16>
    %cst_4 = arith.constant dense<0.000000e+00> : vector<16x128xf32>
    %11 = tpu.matmul %8, %10, %cst_4 {dimension_numbers = #tpu.dot_dimension_numbers<[1], [0], [0], [1], [0, 0, 1, 1], [], []>} : vector<16x128xbf16>, vector<128x128xbf16>, vector<16x128xf32> -> vector<16x128xf32>
    %12 = arith.addf %6, %11 : vector<16x128xf32>
    %13 = vector.extract_strided_slice %5 {offsets = [1, 0], sizes = [16, 128], strides = [1, 1]} : vector<18x128xf32> to vector<16x128xf32>
    %14 = arith.truncf %13 : vector<16x128xf32> to vector<16x128xbf16>
    %c1 = arith.constant 1 : index
    %c0_5 = arith.constant 0 : index
    %c0_6 = arith.constant 0 : index
    %15 = vector.load %arg3[%c1, %c0_5, %c0_6] : memref<3x128x128xbf16, #tpu.memory_space<vmem>>, vector<1x128x128xbf16>
    %16 = vector.shape_cast %15 : vector<1x128x128xbf16> to vector<128x128xbf16>
    %cst_7 = arith.constant dense<0.000000e+00> : vector<16x128xf32>
    %17 = tpu.matmul %14, %16, %cst_7 {dimension_numbers = #tpu.dot_dimension_numbers<[1], [0], [0], [1], [0, 0, 1, 1], [], []>} : vector<16x128xbf16>, vector<128x128xbf16>, vector<16x128xf32> -> vector<16x128xf32>
    %18 = arith.addf %12, %17 : vector<16x128xf32>
    %19 = vector.extract_strided_slice %5 {offsets = [2, 0], sizes = [16, 128], strides = [1, 1]} : vector<18x128xf32> to vector<16x128xf32>
    %20 = arith.truncf %19 : vector<16x128xf32> to vector<16x128xbf16>
    %c2 = arith.constant 2 : index
    %c0_8 = arith.constant 0 : index
    %c0_9 = arith.constant 0 : index
    %21 = vector.load %arg3[%c2, %c0_8, %c0_9] : memref<3x128x128xbf16, #tpu.memory_space<vmem>>, vector<1x128x128xbf16>
    %22 = vector.shape_cast %21 : vector<1x128x128xbf16> to vector<128x128xbf16>
    %cst_10 = arith.constant dense<0.000000e+00> : vector<16x128xf32>
    %23 = tpu.matmul %20, %22, %cst_10 {dimension_numbers = #tpu.dot_dimension_numbers<[1], [0], [0], [1], [0, 0, 1, 1], [], []>} : vector<16x128xbf16>, vector<128x128xbf16>, vector<16x128xf32> -> vector<16x128xf32>
    %24 = arith.addf %18, %23 : vector<16x128xf32>
    %c0_11 = arith.constant 0 : index
    %c0_12 = arith.constant 0 : index
    %25 = vector.load %arg4[%c0_11, %c0_12] : memref<1x128xf32, #tpu.memory_space<vmem>>, vector<1x128xf32>
    %26 = vector.broadcast %25 : vector<1x128xf32> to vector<16x128xf32>
    %27 = arith.addf %24, %26 : vector<16x128xf32>
    %cst_13 = arith.constant 0.000000e+00 : f32
    %28 = vector.broadcast %cst_13 : f32 to vector<16x128xf32>
    %29 = arith.maximumf %27, %28 : vector<16x128xf32>
    %30 = arith.truncf %29 : vector<16x128xf32> to vector<16x128xbf16>
    %c0_14 = arith.constant 0 : index
    %c0_15 = arith.constant 0 : index
    %c0_16 = arith.constant 0 : index
    %31 = vector.load %arg5[%c0_14, %c0_15, %c0_16] : memref<1x16x128xbf16, #tpu.memory_space<vmem>>, vector<1x16x128xbf16>
    %32 = vector.shape_cast %31 : vector<1x16x128xbf16> to vector<16x128xbf16>
    %33 = vector.shape_cast %30 : vector<16x128xbf16> to vector<1x16x128xbf16>
    tpu.vector_store %arg5[%c0_14, %c0_15, %c0_16], %33 {strides = array<i32>} : memref<1x16x128xbf16, #tpu.memory_space<vmem>>, vector<1x16x128xbf16>,
    return
  }
  func.func @transform_0(%arg0: i32, %arg1: i32) -> (i32, i32, i32) {
    %c0_i32 = arith.constant 0 : i32
    %c0_i32_0 = arith.constant 0 : i32
    %c0_i32_1 = arith.constant 0 : i32
    return %arg0, %c0_i32, %c0_i32_0 : i32, i32, i32
  }
  func.func @transform_1(%arg0: i32, %arg1: i32) -> (i32, i32, i32) {
    %c0_i32 = arith.constant 0 : i32
    %c0_i32_0 = arith.constant 0 : i32
    %c0_i32_1 = arith.constant 0 : i32
    %c0_i32_2 = arith.constant 0 : i32
    return %c0_i32, %c0_i32_0, %c0_i32_1 : i32, i32, i32
  }
  func.func @transform_2(%arg0: i32, %arg1: i32) -> (i32, i32) {
    %c0_i32 = arith.constant 0 : i32
    %c0_i32_0 = arith.constant 0 : i32
    %c0_i32_1 = arith.constant 0 : i32
    return %c0_i32, %c0_i32_0 : i32, i32
  }
  func.func @transform_3(%arg0: i32, %arg1: i32) -> (i32, i32, i32) {
    %c0_i32 = arith.constant 0 : i32
    %c0_i32_0 = arith.constant 0 : i32
    return %arg0, %arg1, %c0_i32 : i32, i32, i32
  }
}

module attributes {stable_mosaic.version = 11 : i64} {
  func.func @_conv_bn_relu_kernel(%arg0: i32, %arg1: i32, %arg2: memref<1x17x256xbf16, #tpu.memory_space<vmem>>, %arg3: memref<2x256x128xbf16, #tpu.memory_space<vmem>>, %arg4: memref<1x128xf32, #tpu.memory_space<vmem>>, %arg5: memref<1x16x128xf32, #tpu.memory_space<vmem>>) attributes {dimension_semantics = [#tpu.dimension_semantics<parallel>, #tpu.dimension_semantics<parallel>], iteration_bounds = array<i64: 2, 1>, scalar_prefetch = 0 : i64, scratch_operands = 0 : i64, tpu.core_type = #tpu.core_type<tc>, window_params = [{transform_indices = @transform_0, window_bounds = array<i64: 1, 17, 256>}, {pipeline_mode = #tpu.pipeline_mode<synchronous>, transform_indices = @transform_1, window_bounds = array<i64: 2, 256, 128>}, {pipeline_mode = #tpu.pipeline_mode<synchronous>, transform_indices = @transform_2, window_bounds = array<i64: 1, 128>}, {transform_indices = @transform_3, window_bounds = array<i64: 1, 16, 128>}]} {
    %c16_i32 = arith.constant 16 : i32
    %0 = arith.muli %arg1, %c16_i32 : i32
    %1 = tpu.assume_multiple %0, 16 : i32
    %c0 = arith.constant 0 : index
    %2 = arith.index_cast %1 : i32 to index
    %c0_0 = arith.constant 0 : index
    %3 = vector.load %arg2[%c0, %2, %c0_0] : memref<1x17x256xbf16, #tpu.memory_space<vmem>>, vector<1x17x256xbf16>
    %4 = vector.shape_cast %3 : vector<1x17x256xbf16> to vector<17x256xbf16>
    %5 = arith.extf %4 : vector<17x256xbf16> to vector<17x256xf32>
    %cst = arith.constant 0.000000e+00 : f32
    %6 = vector.broadcast %cst : f32 to vector<16x128xf32>
    %7 = vector.extract_strided_slice %5 {offsets = [0, 0], sizes = [16, 256], strides = [1, 1]} : vector<17x256xf32> to vector<16x256xf32>
    %8 = arith.truncf %7 : vector<16x256xf32> to vector<16x256xbf16>
    %c0_1 = arith.constant 0 : index
    %c0_2 = arith.constant 0 : index
    %c0_3 = arith.constant 0 : index
    %9 = vector.load %arg3[%c0_1, %c0_2, %c0_3] : memref<2x256x128xbf16, #tpu.memory_space<vmem>>, vector<1x256x128xbf16>
    %10 = vector.shape_cast %9 : vector<1x256x128xbf16> to vector<256x128xbf16>
    %cst_4 = arith.constant dense<0.000000e+00> : vector<16x128xf32>
    %11 = tpu.matmul %8, %10, %cst_4 {dimension_numbers = #tpu.dot_dimension_numbers<[1], [0], [0], [1], [0, 0, 1, 1], [], []>} : vector<16x256xbf16>, vector<256x128xbf16>, vector<16x128xf32> -> vector<16x128xf32>
    %12 = arith.addf %6, %11 : vector<16x128xf32>
    %13 = vector.extract_strided_slice %5 {offsets = [1, 0], sizes = [16, 256], strides = [1, 1]} : vector<17x256xf32> to vector<16x256xf32>
    %14 = arith.truncf %13 : vector<16x256xf32> to vector<16x256xbf16>
    %c1 = arith.constant 1 : index
    %c0_5 = arith.constant 0 : index
    %c0_6 = arith.constant 0 : index
    %15 = vector.load %arg3[%c1, %c0_5, %c0_6] : memref<2x256x128xbf16, #tpu.memory_space<vmem>>, vector<1x256x128xbf16>
    %16 = vector.shape_cast %15 : vector<1x256x128xbf16> to vector<256x128xbf16>
    %cst_7 = arith.constant dense<0.000000e+00> : vector<16x128xf32>
    %17 = tpu.matmul %14, %16, %cst_7 {dimension_numbers = #tpu.dot_dimension_numbers<[1], [0], [0], [1], [0, 0, 1, 1], [], []>} : vector<16x256xbf16>, vector<256x128xbf16>, vector<16x128xf32> -> vector<16x128xf32>
    %18 = arith.addf %12, %17 : vector<16x128xf32>
    %c0_8 = arith.constant 0 : index
    %c0_9 = arith.constant 0 : index
    %19 = vector.load %arg4[%c0_8, %c0_9] : memref<1x128xf32, #tpu.memory_space<vmem>>, vector<1x128xf32>
    %20 = vector.broadcast %19 : vector<1x128xf32> to vector<16x128xf32>
    %21 = arith.addf %18, %20 : vector<16x128xf32>
    %cst_10 = arith.constant 0.000000e+00 : f32
    %22 = vector.broadcast %cst_10 : f32 to vector<16x128xf32>
    %23 = arith.maximumf %21, %22 : vector<16x128xf32>
    %c0_11 = arith.constant 0 : index
    %c0_12 = arith.constant 0 : index
    %c0_13 = arith.constant 0 : index
    %24 = vector.load %arg5[%c0_11, %c0_12, %c0_13] : memref<1x16x128xf32, #tpu.memory_space<vmem>>, vector<1x16x128xf32>
    %25 = vector.shape_cast %24 : vector<1x16x128xf32> to vector<16x128xf32>
    %26 = vector.shape_cast %23 : vector<16x128xf32> to vector<1x16x128xf32>
    tpu.vector_store %arg5[%c0_11, %c0_12, %c0_13], %26 {strides = array<i32>} : memref<1x16x128xf32, #tpu.memory_space<vmem>>, vector<1x16x128xf32>,
    return
  }
  func.func @transform_0(%arg0: i32, %arg1: i32) -> (i32, i32, i32) {
    %c0_i32 = arith.constant 0 : i32
    %c0_i32_0 = arith.constant 0 : i32
    %c0_i32_1 = arith.constant 0 : i32
    return %arg0, %c0_i32, %c0_i32_0 : i32, i32, i32
  }
  func.func @transform_1(%arg0: i32, %arg1: i32) -> (i32, i32, i32) {
    %c0_i32 = arith.constant 0 : i32
    %c0_i32_0 = arith.constant 0 : i32
    %c0_i32_1 = arith.constant 0 : i32
    %c0_i32_2 = arith.constant 0 : i32
    return %c0_i32, %c0_i32_0, %c0_i32_1 : i32, i32, i32
  }
  func.func @transform_2(%arg0: i32, %arg1: i32) -> (i32, i32) {
    %c0_i32 = arith.constant 0 : i32
    %c0_i32_0 = arith.constant 0 : i32
    %c0_i32_1 = arith.constant 0 : i32
    return %c0_i32, %c0_i32_0 : i32, i32
  }
  func.func @transform_3(%arg0: i32, %arg1: i32) -> (i32, i32, i32) {
    %c0_i32 = arith.constant 0 : i32
    %c0_i32_0 = arith.constant 0 : i32
    return %arg0, %arg1, %c0_i32 : i32, i32, i32
  }
}

module attributes {stable_mosaic.version = 11 : i64} {
  func.func @_maxpool3_s2_kernel(%arg0: i32, %arg1: i32, %arg2: memref<1x9x8xf32, #tpu.memory_space<vmem>>, %arg3: memref<1x8x4xf32, #tpu.memory_space<vmem>>) attributes {dimension_semantics = [#tpu.dimension_semantics<parallel>, #tpu.dimension_semantics<parallel>], iteration_bounds = array<i64: 2, 1>, scalar_prefetch = 0 : i64, scratch_operands = 0 : i64, tpu.core_type = #tpu.core_type<tc>, window_params = [{transform_indices = @transform_0, window_bounds = array<i64: 1, 9, 8>}, {transform_indices = @transform_1, window_bounds = array<i64: 1, 8, 4>}]} {
    %c8_i32 = arith.constant 8 : i32
    %0 = arith.muli %arg1, %c8_i32 : i32
    %1 = tpu.assume_multiple %0, 8 : i32
    %c0 = arith.constant 0 : index
    %2 = arith.index_cast %1 : i32 to index
    %c0_0 = arith.constant 0 : index
    %3 = vector.load %arg2[%c0, %2, %c0_0] : memref<1x9x8xf32, #tpu.memory_space<vmem>>, vector<1x9x8xf32>
    %4 = vector.shape_cast %3 : vector<1x9x8xf32> to vector<9x8xf32>
    %5 = vector.extract_strided_slice %4 {offsets = [0, 0], sizes = [8, 4], strides = [1, 1]} : vector<9x8xf32> to vector<8x4xf32>
    %6 = vector.extract_strided_slice %4 {offsets = [0, 4], sizes = [8, 4], strides = [1, 1]} : vector<9x8xf32> to vector<8x4xf32>
    %7 = vector.extract_strided_slice %4 {offsets = [1, 0], sizes = [8, 4], strides = [1, 1]} : vector<9x8xf32> to vector<8x4xf32>
    %8 = arith.maximumf %5, %6 : vector<8x4xf32>
    %9 = arith.maximumf %8, %7 : vector<8x4xf32>
    %c0_1 = arith.constant 0 : index
    %c0_2 = arith.constant 0 : index
    %c0_3 = arith.constant 0 : index
    %10 = vector.load %arg3[%c0_1, %c0_2, %c0_3] : memref<1x8x4xf32, #tpu.memory_space<vmem>>, vector<1x8x4xf32>
    %11 = vector.shape_cast %10 : vector<1x8x4xf32> to vector<8x4xf32>
    %12 = vector.shape_cast %9 : vector<8x4xf32> to vector<1x8x4xf32>
    tpu.vector_store %arg3[%c0_1, %c0_2, %c0_3], %12 {strides = array<i32>} : memref<1x8x4xf32, #tpu.memory_space<vmem>>, vector<1x8x4xf32>,
    return
  }
  func.func @transform_0(%arg0: i32, %arg1: i32) -> (i32, i32, i32) {
    %c0_i32 = arith.constant 0 : i32
    %c0_i32_0 = arith.constant 0 : i32
    %c0_i32_1 = arith.constant 0 : i32
    return %arg0, %c0_i32, %c0_i32_0 : i32, i32, i32
  }
  func.func @transform_1(%arg0: i32, %arg1: i32) -> (i32, i32, i32) {
    %c0_i32 = arith.constant 0 : i32
    %c0_i32_0 = arith.constant 0 : i32
    return %arg0, %arg1, %c0_i32 : i32, i32, i32
  }
}

module attributes {stable_mosaic.version = 11 : i64} {
  func.func @_conv_bn_relu_kernel(%arg0: i32, %arg1: i32, %arg2: memref<1x17x8xbf16, #tpu.memory_space<vmem>>, %arg3: memref<2x8x384xbf16, #tpu.memory_space<vmem>>, %arg4: memref<1x384xf32, #tpu.memory_space<vmem>>, %arg5: memref<1x16x384xf32, #tpu.memory_space<vmem>>) attributes {dimension_semantics = [#tpu.dimension_semantics<parallel>, #tpu.dimension_semantics<parallel>], iteration_bounds = array<i64: 2, 1>, scalar_prefetch = 0 : i64, scratch_operands = 0 : i64, tpu.core_type = #tpu.core_type<tc>, window_params = [{transform_indices = @transform_0, window_bounds = array<i64: 1, 17, 8>}, {pipeline_mode = #tpu.pipeline_mode<synchronous>, transform_indices = @transform_1, window_bounds = array<i64: 2, 8, 384>}, {pipeline_mode = #tpu.pipeline_mode<synchronous>, transform_indices = @transform_2, window_bounds = array<i64: 1, 384>}, {transform_indices = @transform_3, window_bounds = array<i64: 1, 16, 384>}]} {
    %c16_i32 = arith.constant 16 : i32
    %0 = arith.muli %arg1, %c16_i32 : i32
    %1 = tpu.assume_multiple %0, 16 : i32
    %c0 = arith.constant 0 : index
    %2 = arith.index_cast %1 : i32 to index
    %c0_0 = arith.constant 0 : index
    %3 = vector.load %arg2[%c0, %2, %c0_0] : memref<1x17x8xbf16, #tpu.memory_space<vmem>>, vector<1x17x8xbf16>
    %4 = vector.shape_cast %3 : vector<1x17x8xbf16> to vector<17x8xbf16>
    %5 = arith.extf %4 : vector<17x8xbf16> to vector<17x8xf32>
    %cst = arith.constant 0.000000e+00 : f32
    %6 = vector.broadcast %cst : f32 to vector<16x384xf32>
    %7 = vector.extract_strided_slice %5 {offsets = [0, 0], sizes = [16, 8], strides = [1, 1]} : vector<17x8xf32> to vector<16x8xf32>
    %8 = arith.truncf %7 : vector<16x8xf32> to vector<16x8xbf16>
    %c0_1 = arith.constant 0 : index
    %c0_2 = arith.constant 0 : index
    %c0_3 = arith.constant 0 : index
    %9 = vector.load %arg3[%c0_1, %c0_2, %c0_3] : memref<2x8x384xbf16, #tpu.memory_space<vmem>>, vector<1x8x384xbf16>
    %10 = vector.shape_cast %9 : vector<1x8x384xbf16> to vector<8x384xbf16>
    %cst_4 = arith.constant dense<0.000000e+00> : vector<16x384xf32>
    %11 = tpu.matmul %8, %10, %cst_4 {dimension_numbers = #tpu.dot_dimension_numbers<[1], [0], [0], [1], [0, 0, 1, 1], [], []>} : vector<16x8xbf16>, vector<8x384xbf16>, vector<16x384xf32> -> vector<16x384xf32>
    %12 = arith.addf %6, %11 : vector<16x384xf32>
    %13 = vector.extract_strided_slice %5 {offsets = [1, 0], sizes = [16, 8], strides = [1, 1]} : vector<17x8xf32> to vector<16x8xf32>
    %14 = arith.truncf %13 : vector<16x8xf32> to vector<16x8xbf16>
    %c1 = arith.constant 1 : index
    %c0_5 = arith.constant 0 : index
    %c0_6 = arith.constant 0 : index
    %15 = vector.load %arg3[%c1, %c0_5, %c0_6] : memref<2x8x384xbf16, #tpu.memory_space<vmem>>, vector<1x8x384xbf16>
    %16 = vector.shape_cast %15 : vector<1x8x384xbf16> to vector<8x384xbf16>
    %cst_7 = arith.constant dense<0.000000e+00> : vector<16x384xf32>
    %17 = tpu.matmul %14, %16, %cst_7 {dimension_numbers = #tpu.dot_dimension_numbers<[1], [0], [0], [1], [0, 0, 1, 1], [], []>} : vector<16x8xbf16>, vector<8x384xbf16>, vector<16x384xf32> -> vector<16x384xf32>
    %18 = arith.addf %12, %17 : vector<16x384xf32>
    %c0_8 = arith.constant 0 : index
    %c0_9 = arith.constant 0 : index
    %19 = vector.load %arg4[%c0_8, %c0_9] : memref<1x384xf32, #tpu.memory_space<vmem>>, vector<1x384xf32>
    %20 = vector.broadcast %19 : vector<1x384xf32> to vector<16x384xf32>
    %21 = arith.addf %18, %20 : vector<16x384xf32>
    %cst_10 = arith.constant 0.000000e+00 : f32
    %22 = vector.broadcast %cst_10 : f32 to vector<16x384xf32>
    %23 = arith.maximumf %21, %22 : vector<16x384xf32>
    %c0_11 = arith.constant 0 : index
    %c0_12 = arith.constant 0 : index
    %c0_13 = arith.constant 0 : index
    %24 = vector.load %arg5[%c0_11, %c0_12, %c0_13] : memref<1x16x384xf32, #tpu.memory_space<vmem>>, vector<1x16x384xf32>
    %25 = vector.shape_cast %24 : vector<1x16x384xf32> to vector<16x384xf32>
    %26 = vector.shape_cast %23 : vector<16x384xf32> to vector<1x16x384xf32>
    tpu.vector_store %arg5[%c0_11, %c0_12, %c0_13], %26 {strides = array<i32>} : memref<1x16x384xf32, #tpu.memory_space<vmem>>, vector<1x16x384xf32>,
    return
  }
  func.func @transform_0(%arg0: i32, %arg1: i32) -> (i32, i32, i32) {
    %c0_i32 = arith.constant 0 : i32
    %c0_i32_0 = arith.constant 0 : i32
    %c0_i32_1 = arith.constant 0 : i32
    return %arg0, %c0_i32, %c0_i32_0 : i32, i32, i32
  }
  func.func @transform_1(%arg0: i32, %arg1: i32) -> (i32, i32, i32) {
    %c0_i32 = arith.constant 0 : i32
    %c0_i32_0 = arith.constant 0 : i32
    %c0_i32_1 = arith.constant 0 : i32
    %c0_i32_2 = arith.constant 0 : i32
    return %c0_i32, %c0_i32_0, %c0_i32_1 : i32, i32, i32
  }
  func.func @transform_2(%arg0: i32, %arg1: i32) -> (i32, i32) {
    %c0_i32 = arith.constant 0 : i32
    %c0_i32_0 = arith.constant 0 : i32
    %c0_i32_1 = arith.constant 0 : i32
    return %c0_i32, %c0_i32_0 : i32, i32
  }
  func.func @transform_3(%arg0: i32, %arg1: i32) -> (i32, i32, i32) {
    %c0_i32 = arith.constant 0 : i32
    %c0_i32_0 = arith.constant 0 : i32
    return %arg0, %arg1, %c0_i32 : i32, i32, i32
  }
}

</mosaic_0001>

<llo_original>
// kernel: inception_b_forward.6
$region0: #{inception_b_forward.6}
  #allocation0 [shape = 'u32[]', space=smem, size = 0x4, offset = 0x4, fixed_abs, tag = 'smem constant byte address 0x4 - core index']
  #allocation1 [shape = 'u32[72,128]{1,0:T(1,128)}', space=vmem, size = 0x9000, scoped, tag = 'internal scratch']
  %s0 = inlined_call_operand.vmem [shape: bf16[2,16,4], index: 0, kind: input, shape index: {}]
  %s1 = inlined_call_operand.vmem [shape: bf16[1,4,128], index: 1, kind: input, shape index: {}]
  %s2 = inlined_call_operand.vmem [shape: f32[1,128], index: 2, kind: input, shape index: {}]
  %s3 = inlined_call_operand.vmem [shape: bf16[2,16,128], index: 3, kind: output, shape index: {}]
  %s4 = sld [smem:[#allocation0]]
  $region45: #{inception_b_forward.6} parent=0
    _
  %s6 = ssub.s32 1, %s4
  %s7 = scalar_select 0, %s6, %s4
  loop: start=0, step=1, limit=4
  $region2: #{inception_b_forward.6} parent=0 // loop_pre_header
    _
  $region3: #{inception_b_forward.6} parent=0 // loop_header
    %s9 = sphi 0, %s13
    %p10 = scmp.ge.s32.totalorder %s9, 4
    %s16 = sphi 0, %s28
    %s17 = sphi 0, %s24
    %s18 = sphi 0, %s16
    %s19 = sphi 0, %s17
    %s20 = sphi 0, %s18
    %s21 = sphi 0, %s19
    %s31 = sphi 0, %s33
    %s34 = sphi 0, %s31
    %s35 = sphi 0, %s34
    %s51 = sphi 0, %s35
    %s55 = sphi 0, %s55
    %s57 = sphi 0, %s55
    %s58 = sphi 0, %s57
    %s72 = sphi 0, %s58
    %s76 = sphi 0, %s76
    %s78 = sphi 0, %s76
    %s79 = sphi 0, %s78
    %s93 = sphi 0, %s79
    %s101 = sphi 0, %s103
    %s104 = sphi 0, %s101
    %s105 = sphi 0, %s104
    %s121 = sphi 0, %s105
  $region4: #{inception_b_forward.6} parent=0 // loop_header_branch
    %12 = sbr.rel (%p10) target = $region8
  $region5: #{inception_b_forward.6} parent=0 // loop_body
    %s14 = ssub.s32 %s9, 1
    %s15 = ssub.s32 %s9, 2
    %s22 = sadd.s32 1, %s17
    %p23 = scmp.ge.s32.totalorder %s22, 1
    %s24 = scalar_select %p23, 0, %s22
    %s25 = sadd.s32 1, %s16
    %s26 = scalar_select %p23, %s25, %s16
    %p27 = scmp.ge.s32.totalorder %s26, 2
    %s28 = scalar_select %p27, 0, %s26
    %s29 = ssub.s32 %s16, %s28
    %p30 = scmp.eq.s32.totalorder %s29, 0
    %s32 = sadd.s32 %s31, 1
    %s33 = scalar_select %p30, %s31, %s32
    %p36 = pneg %p30
    %p37 = scmp.eq.s32.totalorder %s9, 1
    %p38 = por %p36, %p37
    %p39 = scmp.ne.s32.totalorder %s31, %s34
    %p40 = scmp.eq.s32.totalorder %s9, 0
    %p41 = por %p39, %p40
    %p42 = scmp.ne.s32.totalorder %s31, %s34
    %p43 = scmp.eq.s32.totalorder %s14, 1
    %p44 = por %p42, %p43
    %p45 = scmp.ne.s32.totalorder %s34, %s35
    %p46 = scmp.eq.s32.totalorder %s14, 0
    %p47 = por %p45, %p46
    %p48 = scmp.ne.s32.totalorder %s34, %s35
    %p49 = scmp.eq.s32.totalorder %s15, 1
    %p50 = por %p48, %p49
    %p52 = scmp.ne.s32.totalorder %s35, %s51
    %p53 = scmp.eq.s32.totalorder %s15, 0
    %p54 = por %p52, %p53
    %s56 = sadd.s32 %s55, 1
    %p59 = scmp.eq.s32.totalorder %s9, 1
    %p60 = scmp.ne.s32.totalorder %s55, %s57
    %p61 = scmp.eq.s32.totalorder %s9, 0
    %p62 = por %p60, %p61
    %p63 = scmp.ne.s32.totalorder %s55, %s57
    %p64 = scmp.eq.s32.totalorder %s14, 1
    %p65 = por %p63, %p64
    %p66 = scmp.ne.s32.totalorder %s57, %s58
    %p67 = scmp.eq.s32.totalorder %s14, 0
    %p68 = por %p66, %p67
    %p69 = scmp.ne.s32.totalorder %s57, %s58
    %p70 = scmp.eq.s32.totalorder %s15, 1
    %p71 = por %p69, %p70
    %p73 = scmp.ne.s32.totalorder %s58, %s72
    %p74 = scmp.eq.s32.totalorder %s15, 0
    %p75 = por %p73, %p74
    %s77 = sadd.s32 %s76, 1
    %p80 = scmp.eq.s32.totalorder %s9, 1
    %p81 = scmp.ne.s32.totalorder %s76, %s78
    %p82 = scmp.eq.s32.totalorder %s9, 0
    %p83 = por %p81, %p82
    %p84 = scmp.ne.s32.totalorder %s76, %s78
    %p85 = scmp.eq.s32.totalorder %s14, 1
    %p86 = por %p84, %p85
    %p87 = scmp.ne.s32.totalorder %s78, %s79
    %p88 = scmp.eq.s32.totalorder %s14, 0
    %p89 = por %p87, %p88
    %p90 = scmp.ne.s32.totalorder %s78, %s79
    %p91 = scmp.eq.s32.totalorder %s15, 1
    %p92 = por %p90, %p91
    %p94 = scmp.ne.s32.totalorder %s79, %s93
    %p95 = scmp.eq.s32.totalorder %s15, 0
    %p96 = por %p94, %p95
    %s97 = ssub.s32 %s16, %s28
    %s98 = ssub.s32 %s17, %s24
    %s99 = sor.u32 %s97, %s98
    %p100 = scmp.eq.s32.totalorder %s99, 0
    %s102 = sadd.s32 %s101, 1
    %s103 = scalar_select %p100, %s101, %s102
    %p106 = pneg %p100
    %p107 = scmp.eq.s32.totalorder %s9, 1
    %p108 = por %p106, %p107
    %p109 = scmp.ne.s32.totalorder %s101, %s104
    %p110 = scmp.eq.s32.totalorder %s9, 0
    %p111 = por %p109, %p110
    %p112 = scmp.ne.s32.totalorder %s101, %s104
    %p113 = scmp.eq.s32.totalorder %s14, 1
    %p114 = por %p112, %p113
    %p115 = scmp.ne.s32.totalorder %s104, %s105
    %p116 = scmp.eq.s32.totalorder %s14, 0
    %p117 = por %p115, %p116
    %p118 = scmp.ne.s32.totalorder %s104, %s105
    %p119 = scmp.eq.s32.totalorder %s15, 1
    %p120 = por %p118, %p119
    %p122 = scmp.ne.s32.totalorder %s105, %s121
    %p123 = scmp.eq.s32.totalorder %s15, 0
    %p124 = por %p122, %p123
    %p125 = scmp.le.s32.totalorder 1, %s9
    %p126 = scmp.lt.s32.totalorder %s9, 3
    %p127 = pnand %p125, %p126
    %p128 = pneg %p127
    // Predicated region
    $region9: #{inception_b_forward.6} parent=5 // pred_check
      _
    $region10: #{inception_b_forward.6} parent=5 // pred_check_branch
      %130 = sbr.rel (%p127) target = $region12
    $region11: #{inception_b_forward.6} parent=5 // pred_region
      %s131 = ssub.s32 %s9, 1
      // Predicated region
      $region13: #{inception_b_forward.6} parent=11 // pred_check
        %p132 = pneg %p68
      $region14: #{inception_b_forward.6} parent=11 // pred_check_branch
        %134 = sbr.rel (%p132) target = $region16
      $region15: #{inception_b_forward.6} parent=11 // pred_region
        _
      $region16: #{inception_b_forward.6} parent=11 // pred_fallthru
        _
      // Predicated region
      $region17: #{inception_b_forward.6} parent=11 // pred_check
        %p135 = pneg %p89
      $region18: #{inception_b_forward.6} parent=11 // pred_check_branch
        %137 = sbr.rel (%p135) target = $region20
      $region19: #{inception_b_forward.6} parent=11 // pred_region
        _
      $region20: #{inception_b_forward.6} parent=11 // pred_fallthru
        _
    $region12: #{inception_b_forward.6} parent=5 // pred_fallthru
      _
    %p138 = scmp.lt.s32.totalorder %s9, 2
    // Predicated region
    $region21: #{inception_b_forward.6} parent=5 // pred_check
      %p139 = pneg %p138
    $region22: #{inception_b_forward.6} parent=5 // pred_check_branch
      %141 = sbr.rel (%p139) target = $region24
    $region23: #{inception_b_forward.6} parent=5 // pred_region
      // Predicated region
      $region25: #{inception_b_forward.6} parent=23 // pred_check
        %p142 = pneg %p41
      $region26: #{inception_b_forward.6} parent=23 // pred_check_branch
        %144 = sbr.rel (%p142) target = $region28
      $region27: #{inception_b_forward.6} parent=23 // pred_region
        %p145 = scmp.lt.s32.totalorder %s16, 1
        %s146 = scalar_select %p145, %s16, 1
        %s147 = smul.addr %s146, 2
        %s148 = smul.addr %s147, 4
        %s149 = scalar_lea.vmem %s0, %s148
      $region28: #{inception_b_forward.6} parent=23 // pred_fallthru
        _
    $region24: #{inception_b_forward.6} parent=5 // pred_fallthru
      _
    %p150 = scmp.le.s32.totalorder 1, %s9
    %p151 = scmp.lt.s32.totalorder %s9, 3
    %p152 = pnand %p150, %p151
    %p153 = pneg %p152
    // Predicated region
    $region29: #{inception_b_forward.6} parent=5 // pred_check
      _
    $region30: #{inception_b_forward.6} parent=5 // pred_check_branch
      %155 = sbr.rel (%p152) target = $region32
    $region31: #{inception_b_forward.6} parent=5 // pred_region
      %s156 = ssub.s32 %s9, 1
      %p157 = scmp.lt.s32.totalorder %s18, 1
      %s158 = scalar_select %p157, %s18, 1
      %s159 = smul.addr %s158, 2
      %s160 = smul.addr %s159, 4
      %s161 = scalar_lea.vmem %s0, %s160
      %p162 = pneg %p47
      %p163 = pneg %p44
      %p164 = pneg %p68
      %p165 = pneg %p65
      %p166 = pneg %p89
      %p167 = pneg %p86
      %p168 = pneg %p117
      %p169 = pneg %p114
      %s170 = smul.u32 2, %s19
      %p171 = scmp.lt.s32.totalorder %s18, 1
      %s172 = scalar_select %p171, %s18, 1
      %p173 = scmp.lt.s32.totalorder %s170, 1
      %s174 = scalar_select %p173, %s170, 1
      %s175 = smul.addr %s172, 2
      %s176 = sadd.s32 %s174, %s175
      %s177 = smul.addr %s176, 4
      %s178 = scalar_lea.vmem %s3, %s177
      %p179 = scmp.lt.s32.totalorder %s18, 1
      %s180 = scalar_select %p179, %s18, 1
      %s181 = smul.addr %s180, 2
      %s182 = smul.addr %s181, 4
      %s183 = scalar_lea.vmem %s0, %s182
      %s184 = smul.u32 2, %s19
      %p185 = scmp.lt.s32.totalorder %s18, 1
      %s186 = scalar_select %p185, %s18, 1
      %p187 = scmp.lt.s32.totalorder %s184, 1
      %s188 = scalar_select %p187, %s184, 1
      %s189 = smul.addr %s186, 2
      %s190 = sadd.s32 %s188, %s189
      %s191 = smul.addr %s190, 4
      %s192 = scalar_lea.vmem %s3, %s191
      %s193 = smul.u32 2, %s19
      %s195 = smul.u32 %s19, 16
      %s196 = sshra.s32 %s195, 3
      %s197 = sand.u32 %s195, 7
      %s198 = smul.addr %s196, 4
      %s199 = scalar_lea.vmem %s183, %s198
      %v200 = vld [vmem:[%s199] sm:$0xf]
      %v201 = vld [vmem:[%s199 + $0x4] sm:$0xf]
      %v202 = vld [vmem:[%s1] sm:$0x3]
      %v203 = vld [vmem:[%s2] sm:$0x1]
      %v205 = vperm.slane %v203, 0
      %v209 = vunpack.c.l.b16 %v200
      %v210 = vunpack.c.l.b16 %v201
      %v211 = vpack.c.b16 %v210, %v209
      %vm212 = vcmask 31744
      %v214 = vsel %vm212, %v211, 0
      %vm216 = vcmask 1041408
      %v218 = vsel %vm216, %v202, 0
      %220 = vmatpush.bf16.msra.mxu0 0
      %221 = vmatpush.bf16.msra.mxu0 0
      %222 = vmatpush.bf16.msra.mxu0 0
      %223 = vmatpush.bf16.msra.mxu0 0
      %224 = vmatpush.bf16.msra.mxu0 0
      %225 = vmatpush.bf16.msra.mxu0 0
      %226 = vmatpush.bf16.msra.mxu0 0
      %227 = vmatpush.bf16.msra.mxu0 %v218
      %228 = vmatmul.bf16.gmra.mxu0 %v214
      %v229 = vpop.f32.mrf.mxu0
      %v230 = vadd.f32 %v205, %v229
      %v231 = vpop.f32.mrf.mxu0
      %v232 = vadd.f32 %v205, %v231
      %233 = vdwg.mxu0
      %v234 = vmax.f32 %v230, 0.0
      %v235 = vmax.f32 %v232, 0.0
      %v236 = vpack.c.bf16 %v234, %v234
      %v237 = vpack.c.bf16 %v235, %v235
      %238 = vst [vmem:[%s192] sm:$0xf] %v236
      %239 = vst [vmem:[%s192 + $0x4] sm:$0xf] %v237
      %s240 = smul.u32 2, %s19
      %p241 = scmp.lt.s32.totalorder %s18, 1
      %s242 = scalar_select %p241, %s18, 1
      %p243 = scmp.lt.s32.totalorder %s240, 1
      %s244 = scalar_select %p243, %s240, 1
      %s245 = smul.addr %s242, 2
      %s246 = sadd.s32 %s244, %s245
      %s247 = smul.addr %s246, 4
      %s248 = scalar_lea.vmem %s3, %s247
      // Predicated region
      $region33: #{inception_b_forward.6} parent=31 // pred_check
        %p249 = pneg %p114
      $region34: #{inception_b_forward.6} parent=31 // pred_check_branch
        %251 = sbr.rel (%p249) target = $region36
      $region35: #{inception_b_forward.6} parent=31 // pred_region
        %s252 = smul.u32 2, %s19
      $region36: #{inception_b_forward.6} parent=31 // pred_fallthru
        _
    $region32: #{inception_b_forward.6} parent=5 // pred_fallthru
      _
    %p253 = scmp.le.s32.totalorder 2, %s9
    // Predicated region
    $region37: #{inception_b_forward.6} parent=5 // pred_check
      %p254 = pneg %p253
    $region38: #{inception_b_forward.6} parent=5 // pred_check_branch
      %256 = sbr.rel (%p254) target = $region40
    $region39: #{inception_b_forward.6} parent=5 // pred_region
      %s257 = ssub.s32 %s9, 2
      // Predicated region
      $region41: #{inception_b_forward.6} parent=39 // pred_check
        %p258 = pneg %p120
      $region42: #{inception_b_forward.6} parent=39 // pred_check_branch
        %260 = sbr.rel (%p258) target = $region44
      $region43: #{inception_b_forward.6} parent=39 // pred_region
        %s261 = smul.u32 2, %s21
        %p262 = scmp.lt.s32.totalorder %s20, 1
        %s263 = scalar_select %p262, %s20, 1
        %p264 = scmp.lt.s32.totalorder %s261, 1
        %s265 = scalar_select %p264, %s261, 1
        %s266 = smul.addr %s263, 2
        %s267 = sadd.s32 %s265, %s266
        %s268 = smul.addr %s267, 4
        %s269 = scalar_lea.vmem %s3, %s268
      $region44: #{inception_b_forward.6} parent=39 // pred_fallthru
        _
    $region40: #{inception_b_forward.6} parent=5 // pred_fallthru
      _
  $region6: #{inception_b_forward.6} parent=0 // loop_footer
    %s13 = sadd.s32 1, %s9
  $region7: #{inception_b_forward.6} parent=0 // loop_footer_branch
    %8 = sbr.rel target = $region3
  $region8: #{inception_b_forward.6} parent=0 // loop_exit
    _

// kernel: inception_b_forward.7
$region0: #{inception_b_forward.7}
  #allocation0 [shape = 'u32[]', space=smem, size = 0x4, offset = 0x4, fixed_abs, tag = 'smem constant byte address 0x4 - core index']
  #allocation1 [shape = 'u32[72,128]{1,0:T(1,128)}', space=vmem, size = 0x9000, scoped, tag = 'internal scratch']
  %s0 = inlined_call_operand.vmem [shape: bf16[2,18,128], index: 0, kind: input, shape index: {}]
  %s1 = inlined_call_operand.vmem [shape: bf16[3,128,128], index: 1, kind: input, shape index: {}]
  %s2 = inlined_call_operand.vmem [shape: f32[1,128], index: 2, kind: input, shape index: {}]
  %s3 = inlined_call_operand.vmem [shape: bf16[2,16,128], index: 3, kind: output, shape index: {}]
  %s4 = sld [smem:[#allocation0]]
  $region45: #{inception_b_forward.7} parent=0
    _
  %s6 = ssub.s32 1, %s4
  %s7 = scalar_select 0, %s6, %s4
  loop: start=0, step=1, limit=4
  $region2: #{inception_b_forward.7} parent=0 // loop_pre_header
    _
  $region3: #{inception_b_forward.7} parent=0 // loop_header
    %s9 = sphi 0, %s13
    %p10 = scmp.ge.s32.totalorder %s9, 4
    %s16 = sphi 0, %s28
    %s17 = sphi 0, %s24
    %s18 = sphi 0, %s16
    %s19 = sphi 0, %s17
    %s20 = sphi 0, %s18
    %s21 = sphi 0, %s19
    %s31 = sphi 0, %s33
    %s34 = sphi 0, %s31
    %s35 = sphi 0, %s34
    %s51 = sphi 0, %s35
    %s55 = sphi 0, %s55
    %s57 = sphi 0, %s55
    %s58 = sphi 0, %s57
    %s72 = sphi 0, %s58
    %s76 = sphi 0, %s76
    %s78 = sphi 0, %s76
    %s79 = sphi 0, %s78
    %s93 = sphi 0, %s79
    %s101 = sphi 0, %s103
    %s104 = sphi 0, %s101
    %s105 = sphi 0, %s104
    %s121 = sphi 0, %s105
  $region4: #{inception_b_forward.7} parent=0 // loop_header_branch
    %12 = sbr.rel (%p10) target = $region8
  $region5: #{inception_b_forward.7} parent=0 // loop_body
    %s14 = ssub.s32 %s9, 1
    %s15 = ssub.s32 %s9, 2
    %s22 = sadd.s32 1, %s17
    %p23 = scmp.ge.s32.totalorder %s22, 1
    %s24 = scalar_select %p23, 0, %s22
    %s25 = sadd.s32 1, %s16
    %s26 = scalar_select %p23, %s25, %s16
    %p27 = scmp.ge.s32.totalorder %s26, 2
    %s28 = scalar_select %p27, 0, %s26
    %s29 = ssub.s32 %s16, %s28
    %p30 = scmp.eq.s32.totalorder %s29, 0
    %s32 = sadd.s32 %s31, 1
    %s33 = scalar_select %p30, %s31, %s32
    %p36 = pneg %p30
    %p37 = scmp.eq.s32.totalorder %s9, 1
    %p38 = por %p36, %p37
    %p39 = scmp.ne.s32.totalorder %s31, %s34
    %p40 = scmp.eq.s32.totalorder %s9, 0
    %p41 = por %p39, %p40
    %p42 = scmp.ne.s32.totalorder %s31, %s34
    %p43 = scmp.eq.s32.totalorder %s14, 1
    %p44 = por %p42, %p43
    %p45 = scmp.ne.s32.totalorder %s34, %s35
    %p46 = scmp.eq.s32.totalorder %s14, 0
    %p47 = por %p45, %p46
    %p48 = scmp.ne.s32.totalorder %s34, %s35
    %p49 = scmp.eq.s32.totalorder %s15, 1
    %p50 = por %p48, %p49
    %p52 = scmp.ne.s32.totalorder %s35, %s51
    %p53 = scmp.eq.s32.totalorder %s15, 0
    %p54 = por %p52, %p53
    %s56 = sadd.s32 %s55, 1
    %p59 = scmp.eq.s32.totalorder %s9, 1
    %p60 = scmp.ne.s32.totalorder %s55, %s57
    %p61 = scmp.eq.s32.totalorder %s9, 0
    %p62 = por %p60, %p61
    %p63 = scmp.ne.s32.totalorder %s55, %s57
    %p64 = scmp.eq.s32.totalorder %s14, 1
    %p65 = por %p63, %p64
    %p66 = scmp.ne.s32.totalorder %s57, %s58
    %p67 = scmp.eq.s32.totalorder %s14, 0
    %p68 = por %p66, %p67
    %p69 = scmp.ne.s32.totalorder %s57, %s58
    %p70 = scmp.eq.s32.totalorder %s15, 1
    %p71 = por %p69, %p70
    %p73 = scmp.ne.s32.totalorder %s58, %s72
    %p74 = scmp.eq.s32.totalorder %s15, 0
    %p75 = por %p73, %p74
    %s77 = sadd.s32 %s76, 1
    %p80 = scmp.eq.s32.totalorder %s9, 1
    %p81 = scmp.ne.s32.totalorder %s76, %s78
    %p82 = scmp.eq.s32.totalorder %s9, 0
    %p83 = por %p81, %p82
    %p84 = scmp.ne.s32.totalorder %s76, %s78
    %p85 = scmp.eq.s32.totalorder %s14, 1
    %p86 = por %p84, %p85
    %p87 = scmp.ne.s32.totalorder %s78, %s79
    %p88 = scmp.eq.s32.totalorder %s14, 0
    %p89 = por %p87, %p88
    %p90 = scmp.ne.s32.totalorder %s78, %s79
    %p91 = scmp.eq.s32.totalorder %s15, 1
    %p92 = por %p90, %p91
    %p94 = scmp.ne.s32.totalorder %s79, %s93
    %p95 = scmp.eq.s32.totalorder %s15, 0
    %p96 = por %p94, %p95
    %s97 = ssub.s32 %s16, %s28
    %s98 = ssub.s32 %s17, %s24
    %s99 = sor.u32 %s97, %s98
    %p100 = scmp.eq.s32.totalorder %s99, 0
    %s102 = sadd.s32 %s101, 1
    %s103 = scalar_select %p100, %s101, %s102
    %p106 = pneg %p100
    %p107 = scmp.eq.s32.totalorder %s9, 1
    %p108 = por %p106, %p107
    %p109 = scmp.ne.s32.totalorder %s101, %s104
    %p110 = scmp.eq.s32.totalorder %s9, 0
    %p111 = por %p109, %p110
    %p112 = scmp.ne.s32.totalorder %s101, %s104
    %p113 = scmp.eq.s32.totalorder %s14, 1
    %p114 = por %p112, %p113
    %p115 = scmp.ne.s32.totalorder %s104, %s105
    %p116 = scmp.eq.s32.totalorder %s14, 0
    %p117 = por %p115, %p116
    %p118 = scmp.ne.s32.totalorder %s104, %s105
    %p119 = scmp.eq.s32.totalorder %s15, 1
    %p120 = por %p118, %p119
    %p122 = scmp.ne.s32.totalorder %s105, %s121
    %p123 = scmp.eq.s32.totalorder %s15, 0
    %p124 = por %p122, %p123
    %p125 = scmp.le.s32.totalorder 1, %s9
    %p126 = scmp.lt.s32.totalorder %s9, 3
    %p127 = pnand %p125, %p126
    %p128 = pneg %p127
    // Predicated region
    $region9: #{inception_b_forward.7} parent=5 // pred_check
      _
    $region10: #{inception_b_forward.7} parent=5 // pred_check_branch
      %130 = sbr.rel (%p127) target = $region12
    $region11: #{inception_b_forward.7} parent=5 // pred_region
      %s131 = ssub.s32 %s9, 1
      // Predicated region
      $region13: #{inception_b_forward.7} parent=11 // pred_check
        %p132 = pneg %p68
      $region14: #{inception_b_forward.7} parent=11 // pred_check_branch
        %134 = sbr.rel (%p132) target = $region16
      $region15: #{inception_b_forward.7} parent=11 // pred_region
        _
      $region16: #{inception_b_forward.7} parent=11 // pred_fallthru
        _
      // Predicated region
      $region17: #{inception_b_forward.7} parent=11 // pred_check
        %p135 = pneg %p89
      $region18: #{inception_b_forward.7} parent=11 // pred_check_branch
        %137 = sbr.rel (%p135) target = $region20
      $region19: #{inception_b_forward.7} parent=11 // pred_region
        _
      $region20: #{inception_b_forward.7} parent=11 // pred_fallthru
        _
    $region12: #{inception_b_forward.7} parent=5 // pred_fallthru
      _
    %p138 = scmp.lt.s32.totalorder %s9, 2
    // Predicated region
    $region21: #{inception_b_forward.7} parent=5 // pred_check
      %p139 = pneg %p138
    $region22: #{inception_b_forward.7} parent=5 // pred_check_branch
      %141 = sbr.rel (%p139) target = $region24
    $region23: #{inception_b_forward.7} parent=5 // pred_region
      // Predicated region
      $region25: #{inception_b_forward.7} parent=23 // pred_check
        %p142 = pneg %p41
      $region26: #{inception_b_forward.7} parent=23 // pred_check_branch
        %144 = sbr.rel (%p142) target = $region28
      $region27: #{inception_b_forward.7} parent=23 // pred_region
        %p145 = scmp.lt.s32.totalorder %s16, 1
        %s146 = scalar_select %p145, %s16, 1
        %s147 = smul.addr %s146, 3
        %s148 = smul.addr %s147, 4
        %s149 = scalar_lea.vmem %s0, %s148
      $region28: #{inception_b_forward.7} parent=23 // pred_fallthru
        _
    $region24: #{inception_b_forward.7} parent=5 // pred_fallthru
      _
    %p150 = scmp.le.s32.totalorder 1, %s9
    %p151 = scmp.lt.s32.totalorder %s9, 3
    %p152 = pnand %p150, %p151
    %p153 = pneg %p152
    // Predicated region
    $region29: #{inception_b_forward.7} parent=5 // pred_check
      _
    $region30: #{inception_b_forward.7} parent=5 // pred_check_branch
      %155 = sbr.rel (%p152) target = $region32
    $region31: #{inception_b_forward.7} parent=5 // pred_region
      %s156 = ssub.s32 %s9, 1
      %p157 = scmp.lt.s32.totalorder %s18, 1
      %s158 = scalar_select %p157, %s18, 1
      %s159 = smul.addr %s158, 3
      %s160 = smul.addr %s159, 4
      %s161 = scalar_lea.vmem %s0, %s160
      %p162 = pneg %p47
      %p163 = pneg %p44
      %p164 = pneg %p68
      %p165 = pneg %p65
      %p166 = pneg %p89
      %p167 = pneg %p86
      %p168 = pneg %p117
      %p169 = pneg %p114
      %s170 = smul.u32 2, %s19
      %p171 = scmp.lt.s32.totalorder %s18, 1
      %s172 = scalar_select %p171, %s18, 1
      %p173 = scmp.lt.s32.totalorder %s170, 1
      %s174 = scalar_select %p173, %s170, 1
      %s175 = smul.addr %s172, 2
      %s176 = sadd.s32 %s174, %s175
      %s177 = smul.addr %s176, 4
      %s178 = scalar_lea.vmem %s3, %s177
      %p179 = scmp.lt.s32.totalorder %s18, 1
      %s180 = scalar_select %p179, %s18, 1
      %s181 = smul.addr %s180, 3
      %s182 = smul.addr %s181, 4
      %s183 = scalar_lea.vmem %s0, %s182
      %s184 = smul.u32 2, %s19
      %p185 = scmp.lt.s32.totalorder %s18, 1
      %s186 = scalar_select %p185, %s18, 1
      %p187 = scmp.lt.s32.totalorder %s184, 1
      %s188 = scalar_select %p187, %s184, 1
      %s189 = smul.addr %s186, 2
      %s190 = sadd.s32 %s188, %s189
      %s191 = smul.addr %s190, 4
      %s192 = scalar_lea.vmem %s3, %s191
      %s193 = smul.u32 2, %s19
      %s194 = smul.u32 %s19, 16
      %s195 = sshra.s32 %s194, 3
      %s196 = sand.u32 %s194, 7
      %s197 = smul.addr %s195, 4
      %s198 = scalar_lea.vmem %s183, %s197
      %v199 = vld [vmem:[%s198] sm:$0xf]
      %v200 = vld [vmem:[%s198 + $0x4] sm:$0xf]
      %v201 = vld [vmem:[%s198 + $0x8] sm:$0x1]
      %v202 = vunpack.c.l.bf16 %v199
      %v203 = vunpack.c.l.bf16 %v200
      %v204 = vunpack.c.l.bf16 %v201
      %v205 = vpack.c.bf16 %v203, %v202
      %v206 = vld [vmem:[%s1] sm:$0xf]
      %v207 = vld [vmem:[%s1 + $0x4] sm:$0xf]
      %v208 = vld [vmem:[%s1 + $0x8] sm:$0xf]
      %v209 = vld [vmem:[%s1 + $0xc] sm:$0xf]
      %v210 = vld [vmem:[%s1 + $0x10] sm:$0xf]
      %v211 = vld [vmem:[%s1 + $0x14] sm:$0xf]
      %v212 = vld [vmem:[%s1 + $0x18] sm:$0xf]
      %v213 = vld [vmem:[%s1 + $0x1c] sm:$0xf]
      %v214 = vld [vmem:[%s1 + $0x20] sm:$0xf]
      %v215 = vld [vmem:[%s1 + $0x24] sm:$0xf]
      %v216 = vld [vmem:[%s1 + $0x28] sm:$0xf]
      %v217 = vld [vmem:[%s1 + $0x2c] sm:$0xf]
      %v218 = vld [vmem:[%s1 + $0x30] sm:$0xf]
      %v219 = vld [vmem:[%s1 + $0x34] sm:$0xf]
      %v220 = vld [vmem:[%s1 + $0x38] sm:$0xf]
      %v221 = vld [vmem:[%s1 + $0x3c] sm:$0xf]
      %v222 = vpack.c.bf16 %v204, %v204
      %s223 = scalar_lea.vmem %s1, 64
      %v224 = vld [vmem:[%s223] sm:$0xf]
      %v225 = vld [vmem:[%s223 + $0x4] sm:$0xf]
      %v226 = vld [vmem:[%s223 + $0x8] sm:$0xf]
      %v227 = vld [vmem:[%s223 + $0xc] sm:$0xf]
      %v228 = vld [vmem:[%s223 + $0x10] sm:$0xf]
      %v229 = vld [vmem:[%s223 + $0x14] sm:$0xf]
      %v230 = vld [vmem:[%s223 + $0x18] sm:$0xf]
      %v231 = vld [vmem:[%s223 + $0x1c] sm:$0xf]
      %v232 = vld [vmem:[%s223 + $0x20] sm:$0xf]
      %v233 = vld [vmem:[%s223 + $0x24] sm:$0xf]
      %v234 = vld [vmem:[%s223 + $0x28] sm:$0xf]
      %v235 = vld [vmem:[%s223 + $0x2c] sm:$0xf]
      %v236 = vld [vmem:[%s223 + $0x30] sm:$0xf]
      %v237 = vld [vmem:[%s223 + $0x34] sm:$0xf]
      %v238 = vld [vmem:[%s223 + $0x38] sm:$0xf]
      %v239 = vld [vmem:[%s223 + $0x3c] sm:$0xf]
      %vm240 = vsmask.f32 7424
      %v242 = vshrl.u32 %v205, 16
      %v244 = vshll.u32 %v205, 16
      %v246 = vrot.slane %v244, 1
      %v247 = vor.u32 %v242, %v246
      %v249 = vshll.u32 %v222, 16
      %v251 = vrot.slane %v249, 1
      %v252 = vsel %vm240, %v247, %v251
      %v270 = vunpack.c.l.b16 %v224
      %v271 = vunpack.c.l.b16 %v225
      %v272 = vunpack.c.l.b16 %v226
      %v273 = vunpack.c.l.b16 %v227
      %v274 = vunpack.c.l.b16 %v228
      %v275 = vunpack.c.l.b16 %v229
      %v276 = vunpack.c.l.b16 %v230
      %v277 = vunpack.c.l.b16 %v231
      %v278 = vunpack.c.l.b16 %v232
      %v279 = vunpack.c.l.b16 %v233
      %v280 = vunpack.c.l.b16 %v234
      %v281 = vunpack.c.l.b16 %v235
      %v282 = vunpack.c.l.b16 %v236
      %v283 = vunpack.c.l.b16 %v237
      %v284 = vunpack.c.l.b16 %v238
      %v285 = vunpack.c.l.b16 %v239
      %v286 = vpack.c.b16 %v271, %v270
      %v287 = vpack.c.b16 %v273, %v272
      %v288 = vpack.c.b16 %v275, %v274
      %v289 = vpack.c.b16 %v277, %v276
      %v290 = vpack.c.b16 %v279, %v278
      %v291 = vpack.c.b16 %v281, %v280
      %v292 = vpack.c.b16 %v283, %v282
      %v293 = vpack.c.b16 %v285, %v284
      %302 = vmatpush.bf16.msra.mxu0 %v293
      %303 = vmatpush.bf16.msra.mxu0 %v292
      %304 = vmatpush.bf16.msra.mxu0 %v291
      %305 = vmatpush.bf16.msra.mxu0 %v290
      %306 = vmatpush.bf16.msra.mxu0 %v289
      %307 = vmatpush.bf16.msra.mxu0 %v288
      %308 = vmatpush.bf16.msra.mxu0 %v287
      %309 = vmatpush.bf16.msra.mxu0 %v286
      %310 = vmatmul.bf16.gmra.mxu0 %v252
      %v311 = vpop.f32.mrf.mxu0
      %v312 = vadd.f32 0.0, %v311
      %v313 = vpop.f32.mrf.mxu0
      %v314 = vadd.f32 0.0, %v313
      %315 = vdwg.mxu0
      %v332 = vunpack.c.l.b16 %v206
      %v333 = vunpack.c.l.b16 %v207
      %v334 = vunpack.c.l.b16 %v208
      %v335 = vunpack.c.l.b16 %v209
      %v336 = vunpack.c.l.b16 %v210
      %v337 = vunpack.c.l.b16 %v211
      %v338 = vunpack.c.l.b16 %v212
      %v339 = vunpack.c.l.b16 %v213
      %v340 = vunpack.c.l.b16 %v214
      %v341 = vunpack.c.l.b16 %v215
      %v342 = vunpack.c.l.b16 %v216
      %v343 = vunpack.c.l.b16 %v217
      %v344 = vunpack.c.l.b16 %v218
      %v345 = vunpack.c.l.b16 %v219
      %v346 = vunpack.c.l.b16 %v220
      %v347 = vunpack.c.l.b16 %v221
      %v348 = vpack.c.b16 %v333, %v332
      %v349 = vpack.c.b16 %v335, %v334
      %v350 = vpack.c.b16 %v337, %v336
      %v351 = vpack.c.b16 %v339, %v338
      %v352 = vpack.c.b16 %v341, %v340
      %v353 = vpack.c.b16 %v343, %v342
      %v354 = vpack.c.b16 %v345, %v344
      %v355 = vpack.c.b16 %v347, %v346
      %364 = vmatpush.bf16.msra.mxu0 %v355
      %365 = vmatpush.bf16.msra.mxu0 %v354
      %366 = vmatpush.bf16.msra.mxu0 %v353
      %367 = vmatpush.bf16.msra.mxu0 %v352
      %368 = vmatpush.bf16.msra.mxu0 %v351
      %369 = vmatpush.bf16.msra.mxu0 %v350
      %370 = vmatpush.bf16.msra.mxu0 %v349
      %371 = vmatpush.bf16.msra.mxu0 %v348
      %372 = vmatmul.bf16.gmra.mxu0 %v205
      %v373 = vpop.f32.mrf.mxu0
      %v374 = vadd.f32 %v312, %v373
      %v375 = vpop.f32.mrf.mxu0
      %v376 = vadd.f32 %v314, %v375
      %377 = vdwg.mxu0
      %s378 = scalar_lea.vmem %s1, 128
      %v379 = vld [vmem:[%s378] sm:$0xf]
      %v380 = vld [vmem:[%s378 + $0x4] sm:$0xf]
      %v381 = vld [vmem:[%s378 + $0x8] sm:$0xf]
      %v382 = vld [vmem:[%s378 + $0xc] sm:$0xf]
      %v383 = vld [vmem:[%s378 + $0x10] sm:$0xf]
      %v384 = vld [vmem:[%s378 + $0x14] sm:$0xf]
      %v385 = vld [vmem:[%s378 + $0x18] sm:$0xf]
      %v386 = vld [vmem:[%s378 + $0x1c] sm:$0xf]
      %v387 = vld [vmem:[%s378 + $0x20] sm:$0xf]
      %v388 = vld [vmem:[%s378 + $0x24] sm:$0xf]
      %v389 = vld [vmem:[%s378 + $0x28] sm:$0xf]
      %v390 = vld [vmem:[%s378 + $0x2c] sm:$0xf]
      %v391 = vld [vmem:[%s378 + $0x30] sm:$0xf]
      %v392 = vld [vmem:[%s378 + $0x34] sm:$0xf]
      %v393 = vld [vmem:[%s378 + $0x38] sm:$0xf]
      %v394 = vld [vmem:[%s378 + $0x3c] sm:$0xf]
      %vm397 = vcmask 1046528
      %v398 = vrot.slane %v205, 1
      %v399 = vrot.slane %v222, 1
      %v400 = vsel %vm397, %v398, %v399
      %v418 = vunpack.c.l.b16 %v379
      %v419 = vunpack.c.l.b16 %v380
      %v420 = vunpack.c.l.b16 %v381
      %v421 = vunpack.c.l.b16 %v382
      %v422 = vunpack.c.l.b16 %v383
      %v423 = vunpack.c.l.b16 %v384
      %v424 = vunpack.c.l.b16 %v385
      %v425 = vunpack.c.l.b16 %v386
      %v426 = vunpack.c.l.b16 %v387
      %v427 = vunpack.c.l.b16 %v388
      %v428 = vunpack.c.l.b16 %v389
      %v429 = vunpack.c.l.b16 %v390
      %v430 = vunpack.c.l.b16 %v391
      %v431 = vunpack.c.l.b16 %v392
      %v432 = vunpack.c.l.b16 %v393
      %v433 = vunpack.c.l.b16 %v394
      %v434 = vpack.c.b16 %v419, %v418
      %v435 = vpack.c.b16 %v421, %v420
      %v436 = vpack.c.b16 %v423, %v422
      %v437 = vpack.c.b16 %v425, %v424
      %v438 = vpack.c.b16 %v427, %v426
      %v439 = vpack.c.b16 %v429, %v428
      %v440 = vpack.c.b16 %v431, %v430
      %v441 = vpack.c.b16 %v433, %v432
      %450 = vmatpush.bf16.msra.mxu0 %v441
      %451 = vmatpush.bf16.msra.mxu0 %v440
      %452 = vmatpush.bf16.msra.mxu0 %v439
      %453 = vmatpush.bf16.msra.mxu0 %v438
      %454 = vmatpush.bf16.msra.mxu0 %v437
      %455 = vmatpush.bf16.msra.mxu0 %v436
      %456 = vmatpush.bf16.msra.mxu0 %v435
      %457 = vmatpush.bf16.msra.mxu0 %v434
      %458 = vmatmul.bf16.gmra.mxu0 %v400
      %v459 = vpop.f32.mrf.mxu0
      %v460 = vadd.f32 0.0, %v459
      %v461 = vpop.f32.mrf.mxu0
      %v462 = vadd.f32 0.0, %v461
      %463 = vdwg.mxu0
      %v464 = vadd.f32 %v374, %v460
      %v465 = vadd.f32 %v376, %v462
      %v466 = vld [vmem:[%s2] sm:$0x1]
      %v468 = vperm.slane %v466, 0
      %v470 = vadd.f32 %v464, %v468
      %v471 = vadd.f32 %v465, %v468
      %v472 = vmax.f32 %v470, 0.0
      %v473 = vmax.f32 %v471, 0.0
      %v474 = vpack.c.bf16 %v472, %v472
      %v475 = vpack.c.bf16 %v473, %v473
      %476 = vst [vmem:[%s192] sm:$0xf] %v474
      %477 = vst [vmem:[%s192 + $0x4] sm:$0xf] %v475
      %s478 = smul.u32 2, %s19
      %p479 = scmp.lt.s32.totalorder %s18, 1
      %s480 = scalar_select %p479, %s18, 1
      %p481 = scmp.lt.s32.totalorder %s478, 1
      %s482 = scalar_select %p481, %s478, 1
      %s483 = smul.addr %s480, 2
      %s484 = sadd.s32 %s482, %s483
      %s485 = smul.addr %s484, 4
      %s486 = scalar_lea.vmem %s3, %s485
      // Predicated region
      $region33: #{inception_b_forward.7} parent=31 // pred_check
        %p487 = pneg %p114
      $region34: #{inception_b_forward.7} parent=31 // pred_check_branch
        %489 = sbr.rel (%p487) target = $region36
      $region35: #{inception_b_forward.7} parent=31 // pred_region
        %s490 = smul.u32 2, %s19
      $region36: #{inception_b_forward.7} parent=31 // pred_fallthru
        _
    $region32: #{inception_b_forward.7} parent=5 // pred_fallthru
      _
    %p491 = scmp.le.s32.totalorder 2, %s9
    // Predicated region
    $region37: #{inception_b_forward.7} parent=5 // pred_check
      %p492 = pneg %p491
    $region38: #{inception_b_forward.7} parent=5 // pred_check_branch
      %494 = sbr.rel (%p492) target = $region40
    $region39: #{inception_b_forward.7} parent=5 // pred_region
      %s495 = ssub.s32 %s9, 2
      // Predicated region
      $region41: #{inception_b_forward.7} parent=39 // pred_check
        %p496 = pneg %p120
      $region42: #{inception_b_forward.7} parent=39 // pred_check_branch
        %498 = sbr.rel (%p496) target = $region44
      $region43: #{inception_b_forward.7} parent=39 // pred_region
        %s499 = smul.u32 2, %s21
        %p500 = scmp.lt.s32.totalorder %s20, 1
        %s501 = scalar_select %p500, %s20, 1
        %p502 = scmp.lt.s32.totalorder %s499, 1
        %s503 = scalar_select %p502, %s499, 1
        %s504 = smul.addr %s501, 2
        %s505 = sadd.s32 %s503, %s504
        %s506 = smul.addr %s505, 4
        %s507 = scalar_lea.vmem %s3, %s506
      $region44: #{inception_b_forward.7} parent=39 // pred_fallthru
        _
    $region40: #{inception_b_forward.7} parent=5 // pred_fallthru
      _
  $region6: #{inception_b_forward.7} parent=0 // loop_footer
    %s13 = sadd.s32 1, %s9
  $region7: #{inception_b_forward.7} parent=0 // loop_footer_branch
    %8 = sbr.rel target = $region3
  $region8: #{inception_b_forward.7} parent=0 // loop_exit
    _

// kernel: inception_b_forward.8
$region0: #{inception_b_forward.8}
  #allocation0 [shape = 'u32[]', space=smem, size = 0x4, offset = 0x4, fixed_abs, tag = 'smem constant byte address 0x4 - core index']
  #allocation1 [shape = 'u32[72,128]{1,0:T(1,128)}', space=vmem, size = 0x9000, scoped, tag = 'internal scratch']
  %s0 = inlined_call_operand.vmem [shape: bf16[2,17,256], index: 0, kind: input, shape index: {}]
  %s1 = inlined_call_operand.vmem [shape: bf16[2,256,128], index: 1, kind: input, shape index: {}]
  %s2 = inlined_call_operand.vmem [shape: f32[1,128], index: 2, kind: input, shape index: {}]
  %s3 = inlined_call_operand.vmem [shape: f32[2,16,128], index: 3, kind: output, shape index: {}]
  %s4 = sld [smem:[#allocation0]]
  $region45: #{inception_b_forward.8} parent=0
    _
  %s6 = ssub.s32 1, %s4
  %s7 = scalar_select 0, %s6, %s4
  loop: start=0, step=1, limit=4
  $region2: #{inception_b_forward.8} parent=0 // loop_pre_header
    _
  $region3: #{inception_b_forward.8} parent=0 // loop_header
    %s9 = sphi 0, %s13
    %p10 = scmp.ge.s32.totalorder %s9, 4
    %s16 = sphi 0, %s28
    %s17 = sphi 0, %s24
    %s18 = sphi 0, %s16
    %s19 = sphi 0, %s17
    %s20 = sphi 0, %s18
    %s21 = sphi 0, %s19
    %s31 = sphi 0, %s33
    %s34 = sphi 0, %s31
    %s35 = sphi 0, %s34
    %s51 = sphi 0, %s35
    %s55 = sphi 0, %s55
    %s57 = sphi 0, %s55
    %s58 = sphi 0, %s57
    %s72 = sphi 0, %s58
    %s76 = sphi 0, %s76
    %s78 = sphi 0, %s76
    %s79 = sphi 0, %s78
    %s93 = sphi 0, %s79
    %s101 = sphi 0, %s103
    %s104 = sphi 0, %s101
    %s105 = sphi 0, %s104
    %s121 = sphi 0, %s105
  $region4: #{inception_b_forward.8} parent=0 // loop_header_branch
    %12 = sbr.rel (%p10) target = $region8
  $region5: #{inception_b_forward.8} parent=0 // loop_body
    %s14 = ssub.s32 %s9, 1
    %s15 = ssub.s32 %s9, 2
    %s22 = sadd.s32 1, %s17
    %p23 = scmp.ge.s32.totalorder %s22, 1
    %s24 = scalar_select %p23, 0, %s22
    %s25 = sadd.s32 1, %s16
    %s26 = scalar_select %p23, %s25, %s16
    %p27 = scmp.ge.s32.totalorder %s26, 2
    %s28 = scalar_select %p27, 0, %s26
    %s29 = ssub.s32 %s16, %s28
    %p30 = scmp.eq.s32.totalorder %s29, 0
    %s32 = sadd.s32 %s31, 1
    %s33 = scalar_select %p30, %s31, %s32
    %p36 = pneg %p30
    %p37 = scmp.eq.s32.totalorder %s9, 1
    %p38 = por %p36, %p37
    %p39 = scmp.ne.s32.totalorder %s31, %s34
    %p40 = scmp.eq.s32.totalorder %s9, 0
    %p41 = por %p39, %p40
    %p42 = scmp.ne.s32.totalorder %s31, %s34
    %p43 = scmp.eq.s32.totalorder %s14, 1
    %p44 = por %p42, %p43
    %p45 = scmp.ne.s32.totalorder %s34, %s35
    %p46 = scmp.eq.s32.totalorder %s14, 0
    %p47 = por %p45, %p46
    %p48 = scmp.ne.s32.totalorder %s34, %s35
    %p49 = scmp.eq.s32.totalorder %s15, 1
    %p50 = por %p48, %p49
    %p52 = scmp.ne.s32.totalorder %s35, %s51
    %p53 = scmp.eq.s32.totalorder %s15, 0
    %p54 = por %p52, %p53
    %s56 = sadd.s32 %s55, 1
    %p59 = scmp.eq.s32.totalorder %s9, 1
    %p60 = scmp.ne.s32.totalorder %s55, %s57
    %p61 = scmp.eq.s32.totalorder %s9, 0
    %p62 = por %p60, %p61
    %p63 = scmp.ne.s32.totalorder %s55, %s57
    %p64 = scmp.eq.s32.totalorder %s14, 1
    %p65 = por %p63, %p64
    %p66 = scmp.ne.s32.totalorder %s57, %s58
    %p67 = scmp.eq.s32.totalorder %s14, 0
    %p68 = por %p66, %p67
    %p69 = scmp.ne.s32.totalorder %s57, %s58
    %p70 = scmp.eq.s32.totalorder %s15, 1
    %p71 = por %p69, %p70
    %p73 = scmp.ne.s32.totalorder %s58, %s72
    %p74 = scmp.eq.s32.totalorder %s15, 0
    %p75 = por %p73, %p74
    %s77 = sadd.s32 %s76, 1
    %p80 = scmp.eq.s32.totalorder %s9, 1
    %p81 = scmp.ne.s32.totalorder %s76, %s78
    %p82 = scmp.eq.s32.totalorder %s9, 0
    %p83 = por %p81, %p82
    %p84 = scmp.ne.s32.totalorder %s76, %s78
    %p85 = scmp.eq.s32.totalorder %s14, 1
    %p86 = por %p84, %p85
    %p87 = scmp.ne.s32.totalorder %s78, %s79
    %p88 = scmp.eq.s32.totalorder %s14, 0
    %p89 = por %p87, %p88
    %p90 = scmp.ne.s32.totalorder %s78, %s79
    %p91 = scmp.eq.s32.totalorder %s15, 1
    %p92 = por %p90, %p91
    %p94 = scmp.ne.s32.totalorder %s79, %s93
    %p95 = scmp.eq.s32.totalorder %s15, 0
    %p96 = por %p94, %p95
    %s97 = ssub.s32 %s16, %s28
    %s98 = ssub.s32 %s17, %s24
    %s99 = sor.u32 %s97, %s98
    %p100 = scmp.eq.s32.totalorder %s99, 0
    %s102 = sadd.s32 %s101, 1
    %s103 = scalar_select %p100, %s101, %s102
    %p106 = pneg %p100
    %p107 = scmp.eq.s32.totalorder %s9, 1
    %p108 = por %p106, %p107
    %p109 = scmp.ne.s32.totalorder %s101, %s104
    %p110 = scmp.eq.s32.totalorder %s9, 0
    %p111 = por %p109, %p110
    %p112 = scmp.ne.s32.totalorder %s101, %s104
    %p113 = scmp.eq.s32.totalorder %s14, 1
    %p114 = por %p112, %p113
    %p115 = scmp.ne.s32.totalorder %s104, %s105
    %p116 = scmp.eq.s32.totalorder %s14, 0
    %p117 = por %p115, %p116
    %p118 = scmp.ne.s32.totalorder %s104, %s105
    %p119 = scmp.eq.s32.totalorder %s15, 1
    %p120 = por %p118, %p119
    %p122 = scmp.ne.s32.totalorder %s105, %s121
    %p123 = scmp.eq.s32.totalorder %s15, 0
    %p124 = por %p122, %p123
    %p125 = scmp.le.s32.totalorder 1, %s9
    %p126 = scmp.lt.s32.totalorder %s9, 3
    %p127 = pnand %p125, %p126
    %p128 = pneg %p127
    // Predicated region
    $region9: #{inception_b_forward.8} parent=5 // pred_check
      _
    $region10: #{inception_b_forward.8} parent=5 // pred_check_branch
      %130 = sbr.rel (%p127) target = $region12
    $region11: #{inception_b_forward.8} parent=5 // pred_region
      %s131 = ssub.s32 %s9, 1
      // Predicated region
      $region13: #{inception_b_forward.8} parent=11 // pred_check
        %p132 = pneg %p68
      $region14: #{inception_b_forward.8} parent=11 // pred_check_branch
        %134 = sbr.rel (%p132) target = $region16
      $region15: #{inception_b_forward.8} parent=11 // pred_region
        _
      $region16: #{inception_b_forward.8} parent=11 // pred_fallthru
        _
      // Predicated region
      $region17: #{inception_b_forward.8} parent=11 // pred_check
        %p135 = pneg %p89
      $region18: #{inception_b_forward.8} parent=11 // pred_check_branch
        %137 = sbr.rel (%p135) target = $region20
      $region19: #{inception_b_forward.8} parent=11 // pred_region
        _
      $region20: #{inception_b_forward.8} parent=11 // pred_fallthru
        _
    $region12: #{inception_b_forward.8} parent=5 // pred_fallthru
      _
    %p138 = scmp.lt.s32.totalorder %s9, 2
    // Predicated region
    $region21: #{inception_b_forward.8} parent=5 // pred_check
      %p139 = pneg %p138
    $region22: #{inception_b_forward.8} parent=5 // pred_check_branch
      %141 = sbr.rel (%p139) target = $region24
    $region23: #{inception_b_forward.8} parent=5 // pred_region
      // Predicated region
      $region25: #{inception_b_forward.8} parent=23 // pred_check
        %p142 = pneg %p41
      $region26: #{inception_b_forward.8} parent=23 // pred_check_branch
        %144 = sbr.rel (%p142) target = $region28
      $region27: #{inception_b_forward.8} parent=23 // pred_region
        %p145 = scmp.lt.s32.totalorder %s16, 1
        %s146 = scalar_select %p145, %s16, 1
        %s147 = smul.addr %s146, 6
        %s148 = smul.addr %s147, 4
        %s149 = scalar_lea.vmem %s0, %s148
      $region28: #{inception_b_forward.8} parent=23 // pred_fallthru
        _
    $region24: #{inception_b_forward.8} parent=5 // pred_fallthru
      _
    %p150 = scmp.le.s32.totalorder 1, %s9
    %p151 = scmp.lt.s32.totalorder %s9, 3
    %p152 = pnand %p150, %p151
    %p153 = pneg %p152
    // Predicated region
    $region29: #{inception_b_forward.8} parent=5 // pred_check
      _
    $region30: #{inception_b_forward.8} parent=5 // pred_check_branch
      %155 = sbr.rel (%p152) target = $region32
    $region31: #{inception_b_forward.8} parent=5 // pred_region
      %s156 = ssub.s32 %s9, 1
      %p157 = scmp.lt.s32.totalorder %s18, 1
      %s158 = scalar_select %p157, %s18, 1
      %s159 = smul.addr %s158, 6
      %s160 = smul.addr %s159, 4
      %s161 = scalar_lea.vmem %s0, %s160
      %p162 = pneg %p47
      %p163 = pneg %p44
      %p164 = pneg %p68
      %p165 = pneg %p65
      %p166 = pneg %p89
      %p167 = pneg %p86
      %p168 = pneg %p117
      %p169 = pneg %p114
      %s170 = smul.u32 2, %s19
      %p171 = scmp.lt.s32.totalorder %s18, 1
      %s172 = scalar_select %p171, %s18, 1
      %p173 = scmp.lt.s32.totalorder %s170, 1
      %s174 = scalar_select %p173, %s170, 1
      %s175 = smul.addr %s172, 2
      %s176 = sadd.s32 %s174, %s175
      %s177 = smul.addr %s176, 8
      %s178 = scalar_lea.vmem %s3, %s177
      %p179 = scmp.lt.s32.totalorder %s18, 1
      %s180 = scalar_select %p179, %s18, 1
      %s181 = smul.addr %s180, 6
      %s182 = smul.addr %s181, 4
      %s183 = scalar_lea.vmem %s0, %s182
      %s184 = smul.u32 2, %s19
      %p185 = scmp.lt.s32.totalorder %s18, 1
      %s186 = scalar_select %p185, %s18, 1
      %p187 = scmp.lt.s32.totalorder %s184, 1
      %s188 = scalar_select %p187, %s184, 1
      %s189 = smul.addr %s186, 2
      %s190 = sadd.s32 %s188, %s189
      %s191 = smul.addr %s190, 8
      %s192 = scalar_lea.vmem %s3, %s191
      %s193 = smul.u32 2, %s19
      %s194 = smul.u32 %s19, 16
      %s195 = sshra.s32 %s194, 3
      %s196 = sand.u32 %s194, 7
      %s197 = smul.u32 %s195, 2
      %s198 = smul.addr %s197, 4
      %s199 = scalar_lea.vmem %s183, %s198
      %v200 = vld [vmem:[%s199] sm:$0xff]
      %v201 = vld [vmem:[%s199 + $0x8] sm:$0xff]
      %v202 = vld [vmem:[%s199 + $0x10] sm:$0x11]
      %v203 = vunpack.c.l.bf16 %v200
      %v204 = vunpack.c.h.bf16 %v200
      %v205 = vunpack.c.l.bf16 %v201
      %v206 = vunpack.c.h.bf16 %v201
      %v207 = vunpack.c.l.bf16 %v202
      %v208 = vunpack.c.h.bf16 %v202
      %v209 = vpack.c.bf16 %v205, %v203
      %v210 = vpack.c.bf16 %v206, %v204
      %v211 = vld [vmem:[%s1] sm:$0xf]
      %v212 = vld [vmem:[%s1 + $0x4] sm:$0xf]
      %v213 = vld [vmem:[%s1 + $0x8] sm:$0xf]
      %v214 = vld [vmem:[%s1 + $0xc] sm:$0xf]
      %v215 = vld [vmem:[%s1 + $0x10] sm:$0xf]
      %v216 = vld [vmem:[%s1 + $0x14] sm:$0xf]
      %v217 = vld [vmem:[%s1 + $0x18] sm:$0xf]
      %v218 = vld [vmem:[%s1 + $0x1c] sm:$0xf]
      %v219 = vld [vmem:[%s1 + $0x20] sm:$0xf]
      %v220 = vld [vmem:[%s1 + $0x24] sm:$0xf]
      %v221 = vld [vmem:[%s1 + $0x28] sm:$0xf]
      %v222 = vld [vmem:[%s1 + $0x2c] sm:$0xf]
      %v223 = vld [vmem:[%s1 + $0x30] sm:$0xf]
      %v224 = vld [vmem:[%s1 + $0x34] sm:$0xf]
      %v225 = vld [vmem:[%s1 + $0x38] sm:$0xf]
      %v226 = vld [vmem:[%s1 + $0x3c] sm:$0xf]
      %v227 = vld [vmem:[%s1 + $0x40] sm:$0xf]
      %v228 = vld [vmem:[%s1 + $0x44] sm:$0xf]
      %v229 = vld [vmem:[%s1 + $0x48] sm:$0xf]
      %v230 = vld [vmem:[%s1 + $0x4c] sm:$0xf]
      %v231 = vld [vmem:[%s1 + $0x50] sm:$0xf]
      %v232 = vld [vmem:[%s1 + $0x54] sm:$0xf]
      %v233 = vld [vmem:[%s1 + $0x58] sm:$0xf]
      %v234 = vld [vmem:[%s1 + $0x5c] sm:$0xf]
      %v235 = vld [vmem:[%s1 + $0x60] sm:$0xf]
      %v236 = vld [vmem:[%s1 + $0x64] sm:$0xf]
      %v237 = vld [vmem:[%s1 + $0x68] sm:$0xf]
      %v238 = vld [vmem:[%s1 + $0x6c] sm:$0xf]
      %v239 = vld [vmem:[%s1 + $0x70] sm:$0xf]
      %v240 = vld [vmem:[%s1 + $0x74] sm:$0xf]
      %v241 = vld [vmem:[%s1 + $0x78] sm:$0xf]
      %v242 = vld [vmem:[%s1 + $0x7c] sm:$0xf]
      %v243 = vpack.c.bf16 %v207, %v207
      %v244 = vpack.c.bf16 %v208, %v208
      %s245 = scalar_lea.vmem %s1, 128
      %v246 = vld [vmem:[%s245] sm:$0xf]
      %v247 = vld [vmem:[%s245 + $0x4] sm:$0xf]
      %v248 = vld [vmem:[%s245 + $0x8] sm:$0xf]
      %v249 = vld [vmem:[%s245 + $0xc] sm:$0xf]
      %v250 = vld [vmem:[%s245 + $0x10] sm:$0xf]
      %v251 = vld [vmem:[%s245 + $0x14] sm:$0xf]
      %v252 = vld [vmem:[%s245 + $0x18] sm:$0xf]
      %v253 = vld [vmem:[%s245 + $0x1c] sm:$0xf]
      %v254 = vld [vmem:[%s245 + $0x20] sm:$0xf]
      %v255 = vld [vmem:[%s245 + $0x24] sm:$0xf]
      %v256 = vld [vmem:[%s245 + $0x28] sm:$0xf]
      %v257 = vld [vmem:[%s245 + $0x2c] sm:$0xf]
      %v258 = vld [vmem:[%s245 + $0x30] sm:$0xf]
      %v259 = vld [vmem:[%s245 + $0x34] sm:$0xf]
      %v260 = vld [vmem:[%s245 + $0x38] sm:$0xf]
      %v261 = vld [vmem:[%s245 + $0x3c] sm:$0xf]
      %v262 = vld [vmem:[%s245 + $0x40] sm:$0xf]
      %v263 = vld [vmem:[%s245 + $0x44] sm:$0xf]
      %v264 = vld [vmem:[%s245 + $0x48] sm:$0xf]
      %v265 = vld [vmem:[%s245 + $0x4c] sm:$0xf]
      %v266 = vld [vmem:[%s245 + $0x50] sm:$0xf]
      %v267 = vld [vmem:[%s245 + $0x54] sm:$0xf]
      %v268 = vld [vmem:[%s245 + $0x58] sm:$0xf]
      %v269 = vld [vmem:[%s245 + $0x5c] sm:$0xf]
      %v270 = vld [vmem:[%s245 + $0x60] sm:$0xf]
      %v271 = vld [vmem:[%s245 + $0x64] sm:$0xf]
      %v272 = vld [vmem:[%s245 + $0x68] sm:$0xf]
      %v273 = vld [vmem:[%s245 + $0x6c] sm:$0xf]
      %v274 = vld [vmem:[%s245 + $0x70] sm:$0xf]
      %v275 = vld [vmem:[%s245 + $0x74] sm:$0xf]
      %v276 = vld [vmem:[%s245 + $0x78] sm:$0xf]
      %v277 = vld [vmem:[%s245 + $0x7c] sm:$0xf]
      %vm278 = vsmask.f32 7424
      %v280 = vshrl.u32 %v209, 16
      %v282 = vshll.u32 %v209, 16
      %v284 = vrot.slane %v282, 1
      %v285 = vor.u32 %v280, %v284
      %v287 = vshll.u32 %v243, 16
      %v289 = vrot.slane %v287, 1
      %v290 = vsel %vm278, %v285, %v289
      %v292 = vshrl.u32 %v210, 16
      %v294 = vshll.u32 %v210, 16
      %v296 = vrot.slane %v294, 1
      %v297 = vor.u32 %v292, %v296
      %v299 = vshll.u32 %v244, 16
      %v301 = vrot.slane %v299, 1
      %v302 = vsel %vm278, %v297, %v301
      %v337 = vunpack.c.l.b16 %v246
      %v338 = vunpack.c.l.b16 %v247
      %v339 = vunpack.c.l.b16 %v248
      %v340 = vunpack.c.l.b16 %v249
      %v341 = vunpack.c.l.b16 %v250
      %v342 = vunpack.c.l.b16 %v251
      %v343 = vunpack.c.l.b16 %v252
      %v344 = vunpack.c.l.b16 %v253
      %v345 = vunpack.c.l.b16 %v254
      %v346 = vunpack.c.l.b16 %v255
      %v347 = vunpack.c.l.b16 %v256
      %v348 = vunpack.c.l.b16 %v257
      %v349 = vunpack.c.l.b16 %v258
      %v350 = vunpack.c.l.b16 %v259
      %v351 = vunpack.c.l.b16 %v260
      %v352 = vunpack.c.l.b16 %v261
      %v353 = vunpack.c.l.b16 %v262
      %v354 = vunpack.c.l.b16 %v263
      %v355 = vunpack.c.l.b16 %v264
      %v356 = vunpack.c.l.b16 %v265
      %v357 = vunpack.c.l.b16 %v266
      %v358 = vunpack.c.l.b16 %v267
      %v359 = vunpack.c.l.b16 %v268
      %v360 = vunpack.c.l.b16 %v269
      %v361 = vunpack.c.l.b16 %v270
      %v362 = vunpack.c.l.b16 %v271
      %v363 = vunpack.c.l.b16 %v272
      %v364 = vunpack.c.l.b16 %v273
      %v365 = vunpack.c.l.b16 %v274
      %v366 = vunpack.c.l.b16 %v275
      %v367 = vunpack.c.l.b16 %v276
      %v368 = vunpack.c.l.b16 %v277
      %v369 = vpack.c.b16 %v338, %v337
      %v370 = vpack.c.b16 %v340, %v339
      %v371 = vpack.c.b16 %v342, %v341
      %v372 = vpack.c.b16 %v344, %v343
      %v373 = vpack.c.b16 %v346, %v345
      %v374 = vpack.c.b16 %v348, %v347
      %v375 = vpack.c.b16 %v350, %v349
      %v376 = vpack.c.b16 %v352, %v351
      %v377 = vpack.c.b16 %v354, %v353
      %v378 = vpack.c.b16 %v356, %v355
      %v379 = vpack.c.b16 %v358, %v357
      %v380 = vpack.c.b16 %v360, %v359
      %v381 = vpack.c.b16 %v362, %v361
      %v382 = vpack.c.b16 %v364, %v363
      %v383 = vpack.c.b16 %v366, %v365
      %v384 = vpack.c.b16 %v368, %v367
      %401 = vmatpush.bf16.msra.mxu0 %v376
      %402 = vmatpush.bf16.msra.mxu0 %v375
      %403 = vmatpush.bf16.msra.mxu0 %v374
      %404 = vmatpush.bf16.msra.mxu0 %v373
      %405 = vmatpush.bf16.msra.mxu0 %v372
      %406 = vmatpush.bf16.msra.mxu0 %v371
      %407 = vmatpush.bf16.msra.mxu0 %v370
      %408 = vmatpush.bf16.msra.mxu0 %v369
      %409 = vmatmul.bf16.gmra.mxu0 %v290
      %v410 = vpop.f32.mrf.mxu0
      %v411 = vadd.f32 0.0, %v410
      %v412 = vpop.f32.mrf.mxu0
      %v413 = vadd.f32 0.0, %v412
      %414 = vdwg.mxu0
      %415 = vmatpush.bf16.msra.mxu0 %v384
      %416 = vmatpush.bf16.msra.mxu0 %v383
      %417 = vmatpush.bf16.msra.mxu0 %v382
      %418 = vmatpush.bf16.msra.mxu0 %v381
      %419 = vmatpush.bf16.msra.mxu0 %v380
      %420 = vmatpush.bf16.msra.mxu0 %v379
      %421 = vmatpush.bf16.msra.mxu0 %v378
      %422 = vmatpush.bf16.msra.mxu0 %v377
      %423 = vmatmul.bf16.gmra.mxu0 %v302
      %v424 = vpop.f32.mrf.mxu0
      %v425 = vadd.f32 %v411, %v424
      %v426 = vpop.f32.mrf.mxu0
      %v427 = vadd.f32 %v413, %v426
      %428 = vdwg.mxu0
      %v461 = vunpack.c.l.b16 %v211
      %v462 = vunpack.c.l.b16 %v212
      %v463 = vunpack.c.l.b16 %v213
      %v464 = vunpack.c.l.b16 %v214
      %v465 = vunpack.c.l.b16 %v215
      %v466 = vunpack.c.l.b16 %v216
      %v467 = vunpack.c.l.b16 %v217
      %v468 = vunpack.c.l.b16 %v218
      %v469 = vunpack.c.l.b16 %v219
      %v470 = vunpack.c.l.b16 %v220
      %v471 = vunpack.c.l.b16 %v221
      %v472 = vunpack.c.l.b16 %v222
      %v473 = vunpack.c.l.b16 %v223
      %v474 = vunpack.c.l.b16 %v224
      %v475 = vunpack.c.l.b16 %v225
      %v476 = vunpack.c.l.b16 %v226
      %v477 = vunpack.c.l.b16 %v227
      %v478 = vunpack.c.l.b16 %v228
      %v479 = vunpack.c.l.b16 %v229
      %v480 = vunpack.c.l.b16 %v230
      %v481 = vunpack.c.l.b16 %v231
      %v482 = vunpack.c.l.b16 %v232
      %v483 = vunpack.c.l.b16 %v233
      %v484 = vunpack.c.l.b16 %v234
      %v485 = vunpack.c.l.b16 %v235
      %v486 = vunpack.c.l.b16 %v236
      %v487 = vunpack.c.l.b16 %v237
      %v488 = vunpack.c.l.b16 %v238
      %v489 = vunpack.c.l.b16 %v239
      %v490 = vunpack.c.l.b16 %v240
      %v491 = vunpack.c.l.b16 %v241
      %v492 = vunpack.c.l.b16 %v242
      %v493 = vpack.c.b16 %v462, %v461
      %v494 = vpack.c.b16 %v464, %v463
      %v495 = vpack.c.b16 %v466, %v465
      %v496 = vpack.c.b16 %v468, %v467
      %v497 = vpack.c.b16 %v470, %v469
      %v498 = vpack.c.b16 %v472, %v471
      %v499 = vpack.c.b16 %v474, %v473
      %v500 = vpack.c.b16 %v476, %v475
      %v501 = vpack.c.b16 %v478, %v477
      %v502 = vpack.c.b16 %v480, %v479
      %v503 = vpack.c.b16 %v482, %v481
      %v504 = vpack.c.b16 %v484, %v483
      %v505 = vpack.c.b16 %v486, %v485
      %v506 = vpack.c.b16 %v488, %v487
      %v507 = vpack.c.b16 %v490, %v489
      %v508 = vpack.c.b16 %v492, %v491
      %525 = vmatpush.bf16.msra.mxu0 %v500
      %526 = vmatpush.bf16.msra.mxu0 %v499
      %527 = vmatpush.bf16.msra.mxu0 %v498
      %528 = vmatpush.bf16.msra.mxu0 %v497
      %529 = vmatpush.bf16.msra.mxu0 %v496
      %530 = vmatpush.bf16.msra.mxu0 %v495
      %531 = vmatpush.bf16.msra.mxu0 %v494
      %532 = vmatpush.bf16.msra.mxu0 %v493
      %533 = vmatmul.bf16.gmra.mxu0 %v209
      %v534 = vpop.f32.mrf.mxu0
      %v535 = vadd.f32 %v425, %v534
      %v536 = vpop.f32.mrf.mxu0
      %v537 = vadd.f32 %v427, %v536
      %538 = vdwg.mxu0
      %539 = vmatpush.bf16.msra.mxu0 %v508
      %540 = vmatpush.bf16.msra.mxu0 %v507
      %541 = vmatpush.bf16.msra.mxu0 %v506
      %542 = vmatpush.bf16.msra.mxu0 %v505
      %543 = vmatpush.bf16.msra.mxu0 %v504
      %544 = vmatpush.bf16.msra.mxu0 %v503
      %545 = vmatpush.bf16.msra.mxu0 %v502
      %546 = vmatpush.bf16.msra.mxu0 %v501
      %547 = vmatmul.bf16.gmra.mxu0 %v210
      %v548 = vpop.f32.mrf.mxu0
      %v549 = vadd.f32 %v535, %v548
      %v550 = vpop.f32.mrf.mxu0
      %v551 = vadd.f32 %v537, %v550
      %552 = vdwg.mxu0
      %v553 = vld [vmem:[%s2] sm:$0x1]
      %v555 = vperm.slane %v553, 0
      %v557 = vadd.f32 %v549, %v555
      %v558 = vadd.f32 %v551, %v555
      %v559 = vmax.f32 %v557, 0.0
      %v560 = vmax.f32 %v558, 0.0
      %561 = vst [vmem:[%s192] sm:$0xff] %v559
      %562 = vst [vmem:[%s192 + $0x8] sm:$0xff] %v560
      %s563 = smul.u32 2, %s19
      %p564 = scmp.lt.s32.totalorder %s18, 1
      %s565 = scalar_select %p564, %s18, 1
      %p566 = scmp.lt.s32.totalorder %s563, 1
      %s567 = scalar_select %p566, %s563, 1
      %s568 = smul.addr %s565, 2
      %s569 = sadd.s32 %s567, %s568
      %s570 = smul.addr %s569, 8
      %s571 = scalar_lea.vmem %s3, %s570
      // Predicated region
      $region33: #{inception_b_forward.8} parent=31 // pred_check
        %p572 = pneg %p114
      $region34: #{inception_b_forward.8} parent=31 // pred_check_branch
        %574 = sbr.rel (%p572) target = $region36
      $region35: #{inception_b_forward.8} parent=31 // pred_region
        %s575 = smul.u32 2, %s19
      $region36: #{inception_b_forward.8} parent=31 // pred_fallthru
        _
    $region32: #{inception_b_forward.8} parent=5 // pred_fallthru
      _
    %p576 = scmp.le.s32.totalorder 2, %s9
    // Predicated region
    $region37: #{inception_b_forward.8} parent=5 // pred_check
      %p577 = pneg %p576
    $region38: #{inception_b_forward.8} parent=5 // pred_check_branch
      %579 = sbr.rel (%p577) target = $region40
    $region39: #{inception_b_forward.8} parent=5 // pred_region
      %s580 = ssub.s32 %s9, 2
      // Predicated region
      $region41: #{inception_b_forward.8} parent=39 // pred_check
        %p581 = pneg %p120
      $region42: #{inception_b_forward.8} parent=39 // pred_check_branch
        %583 = sbr.rel (%p581) target = $region44
      $region43: #{inception_b_forward.8} parent=39 // pred_region
        %s584 = smul.u32 2, %s21
        %p585 = scmp.lt.s32.totalorder %s20, 1
        %s586 = scalar_select %p585, %s20, 1
        %p587 = scmp.lt.s32.totalorder %s584, 1
        %s588 = scalar_select %p587, %s584, 1
        %s589 = smul.addr %s586, 2
        %s590 = sadd.s32 %s588, %s589
        %s591 = smul.addr %s590, 8
        %s592 = scalar_lea.vmem %s3, %s591
      $region44: #{inception_b_forward.8} parent=39 // pred_fallthru
        _
    $region40: #{inception_b_forward.8} parent=5 // pred_fallthru
      _
  $region6: #{inception_b_forward.8} parent=0 // loop_footer
    %s13 = sadd.s32 1, %s9
  $region7: #{inception_b_forward.8} parent=0 // loop_footer_branch
    %8 = sbr.rel target = $region3
  $region8: #{inception_b_forward.8} parent=0 // loop_exit
    _

// kernel: inception_b_forward.9
$region0: #{inception_b_forward.9}
  #allocation0 [shape = 'u32[]', space=smem, size = 0x4, offset = 0x4, fixed_abs, tag = 'smem constant byte address 0x4 - core index']
  #allocation1 [shape = 'u32[72,128]{1,0:T(1,128)}', space=vmem, size = 0x9000, scoped, tag = 'internal scratch']
  %s0 = inlined_call_operand.vmem [shape: f32[2,9,8], index: 0, kind: input, shape index: {}]
  %s1 = inlined_call_operand.vmem [shape: f32[2,8,4], index: 1, kind: output, shape index: {}]
  %s2 = sld [smem:[#allocation0]]
  $region37: #{inception_b_forward.9} parent=0
    _
  %s4 = ssub.s32 1, %s2
  %s5 = scalar_select 0, %s4, %s2
  loop: start=0, step=1, limit=4
  $region2: #{inception_b_forward.9} parent=0 // loop_pre_header
    _
  $region3: #{inception_b_forward.9} parent=0 // loop_header
    %s7 = sphi 0, %s11
    %p8 = scmp.ge.s32.totalorder %s7, 4
    %s14 = sphi 0, %s26
    %s15 = sphi 0, %s22
    %s16 = sphi 0, %s14
    %s17 = sphi 0, %s15
    %s18 = sphi 0, %s16
    %s19 = sphi 0, %s17
    %s29 = sphi 0, %s31
    %s32 = sphi 0, %s29
    %s33 = sphi 0, %s32
    %s49 = sphi 0, %s33
    %s57 = sphi 0, %s59
    %s60 = sphi 0, %s57
    %s61 = sphi 0, %s60
    %s77 = sphi 0, %s61
  $region4: #{inception_b_forward.9} parent=0 // loop_header_branch
    %10 = sbr.rel (%p8) target = $region8
  $region5: #{inception_b_forward.9} parent=0 // loop_body
    %s12 = ssub.s32 %s7, 1
    %s13 = ssub.s32 %s7, 2
    %s20 = sadd.s32 1, %s15
    %p21 = scmp.ge.s32.totalorder %s20, 1
    %s22 = scalar_select %p21, 0, %s20
    %s23 = sadd.s32 1, %s14
    %s24 = scalar_select %p21, %s23, %s14
    %p25 = scmp.ge.s32.totalorder %s24, 2
    %s26 = scalar_select %p25, 0, %s24
    %s27 = ssub.s32 %s14, %s26
    %p28 = scmp.eq.s32.totalorder %s27, 0
    %s30 = sadd.s32 %s29, 1
    %s31 = scalar_select %p28, %s29, %s30
    %p34 = pneg %p28
    %p35 = scmp.eq.s32.totalorder %s7, 1
    %p36 = por %p34, %p35
    %p37 = scmp.ne.s32.totalorder %s29, %s32
    %p38 = scmp.eq.s32.totalorder %s7, 0
    %p39 = por %p37, %p38
    %p40 = scmp.ne.s32.totalorder %s29, %s32
    %p41 = scmp.eq.s32.totalorder %s12, 1
    %p42 = por %p40, %p41
    %p43 = scmp.ne.s32.totalorder %s32, %s33
    %p44 = scmp.eq.s32.totalorder %s12, 0
    %p45 = por %p43, %p44
    %p46 = scmp.ne.s32.totalorder %s32, %s33
    %p47 = scmp.eq.s32.totalorder %s13, 1
    %p48 = por %p46, %p47
    %p50 = scmp.ne.s32.totalorder %s33, %s49
    %p51 = scmp.eq.s32.totalorder %s13, 0
    %p52 = por %p50, %p51
    %s53 = ssub.s32 %s14, %s26
    %s54 = ssub.s32 %s15, %s22
    %s55 = sor.u32 %s53, %s54
    %p56 = scmp.eq.s32.totalorder %s55, 0
    %s58 = sadd.s32 %s57, 1
    %s59 = scalar_select %p56, %s57, %s58
    %p62 = pneg %p56
    %p63 = scmp.eq.s32.totalorder %s7, 1
    %p64 = por %p62, %p63
    %p65 = scmp.ne.s32.totalorder %s57, %s60
    %p66 = scmp.eq.s32.totalorder %s7, 0
    %p67 = por %p65, %p66
    %p68 = scmp.ne.s32.totalorder %s57, %s60
    %p69 = scmp.eq.s32.totalorder %s12, 1
    %p70 = por %p68, %p69
    %p71 = scmp.ne.s32.totalorder %s60, %s61
    %p72 = scmp.eq.s32.totalorder %s12, 0
    %p73 = por %p71, %p72
    %p74 = scmp.ne.s32.totalorder %s60, %s61
    %p75 = scmp.eq.s32.totalorder %s13, 1
    %p76 = por %p74, %p75
    %p78 = scmp.ne.s32.totalorder %s61, %s77
    %p79 = scmp.eq.s32.totalorder %s13, 0
    %p80 = por %p78, %p79
    %p81 = scmp.le.s32.totalorder 1, %s7
    %p82 = scmp.lt.s32.totalorder %s7, 3
    %p83 = pnand %p81, %p82
    %p84 = pneg %p83
    // Predicated region
    $region9: #{inception_b_forward.9} parent=5 // pred_check
      _
    $region10: #{inception_b_forward.9} parent=5 // pred_check_branch
      %86 = sbr.rel (%p83) target = $region12
    $region11: #{inception_b_forward.9} parent=5 // pred_region
      %s87 = ssub.s32 %s7, 1
    $region12: #{inception_b_forward.9} parent=5 // pred_fallthru
      _
    %p88 = scmp.lt.s32.totalorder %s7, 2
    // Predicated region
    $region13: #{inception_b_forward.9} parent=5 // pred_check
      %p89 = pneg %p88
    $region14: #{inception_b_forward.9} parent=5 // pred_check_branch
      %91 = sbr.rel (%p89) target = $region16
    $region15: #{inception_b_forward.9} parent=5 // pred_region
      // Predicated region
      $region17: #{inception_b_forward.9} parent=15 // pred_check
        %p92 = pneg %p39
      $region18: #{inception_b_forward.9} parent=15 // pred_check_branch
        %94 = sbr.rel (%p92) target = $region20
      $region19: #{inception_b_forward.9} parent=15 // pred_region
        %p95 = scmp.lt.s32.totalorder %s14, 1
        %s96 = scalar_select %p95, %s14, 1
        %s97 = smul.addr %s96, 2
        %s98 = smul.addr %s97, 8
        %s99 = scalar_lea.vmem %s0, %s98
      $region20: #{inception_b_forward.9} parent=15 // pred_fallthru
        _
    $region16: #{inception_b_forward.9} parent=5 // pred_fallthru
      _
    %p100 = scmp.le.s32.totalorder 1, %s7
    %p101 = scmp.lt.s32.totalorder %s7, 3
    %p102 = pnand %p100, %p101
    %p103 = pneg %p102
    // Predicated region
    $region21: #{inception_b_forward.9} parent=5 // pred_check
      _
    $region22: #{inception_b_forward.9} parent=5 // pred_check_branch
      %105 = sbr.rel (%p102) target = $region24
    $region23: #{inception_b_forward.9} parent=5 // pred_region
      %s106 = ssub.s32 %s7, 1
      %p107 = scmp.lt.s32.totalorder %s16, 1
      %s108 = scalar_select %p107, %s16, 1
      %s109 = smul.addr %s108, 2
      %s110 = smul.addr %s109, 8
      %s111 = scalar_lea.vmem %s0, %s110
      %p112 = pneg %p45
      %p113 = pneg %p42
      %p114 = pneg %p73
      %p115 = pneg %p70
      %p116 = scmp.lt.s32.totalorder %s16, 1
      %s117 = scalar_select %p116, %s16, 1
      %p118 = scmp.lt.s32.totalorder %s17, 0
      %s119 = scalar_select %p118, %s17, 0
      %s120 = sadd.s32 %s119, %s117
      %s121 = smul.addr %s120, 8
      %s122 = scalar_lea.vmem %s1, %s121
      %p123 = scmp.lt.s32.totalorder %s16, 1
      %s124 = scalar_select %p123, %s16, 1
      %s125 = smul.addr %s124, 2
      %s126 = smul.addr %s125, 8
      %s127 = scalar_lea.vmem %s0, %s126
      %p128 = scmp.lt.s32.totalorder %s16, 1
      %s129 = scalar_select %p128, %s16, 1
      %p130 = scmp.lt.s32.totalorder %s17, 0
      %s131 = scalar_select %p130, %s17, 0
      %s132 = sadd.s32 %s131, %s129
      %s133 = smul.addr %s132, 8
      %s134 = scalar_lea.vmem %s1, %s133
      %s135 = smul.u32 %s17, 8
      %s136 = scalar_lea.vmem %s127, %s135
      %v137 = vld [vmem:[%s136] sm:$0xff]
      %v138 = vld [vmem:[%s136 + $0x8] sm:$0x1]
      %140 = vrot.lane.b32.xlu0 %v137, 124
      %v141 = vpop.permute.xlu0 %140
      %v143 = vmax.f32 %v137, %v141
      %vm145 = vcmask 1046528
      %v146 = vrot.slane %v137, 1
      %v147 = vrot.slane %v138, 1
      %v148 = vsel %vm145, %v146, %v147
      %v150 = vmax.f32 %v143, %v148
      %vm151 = vcmask 31744
      %152 = vst.msk [vmem:[%s134] sm:$0xff] %vm151, %v150
      %p153 = scmp.lt.s32.totalorder %s16, 1
      %s154 = scalar_select %p153, %s16, 1
      %p155 = scmp.lt.s32.totalorder %s17, 0
      %s156 = scalar_select %p155, %s17, 0
      %s157 = sadd.s32 %s156, %s154
      %s158 = smul.addr %s157, 8
      %s159 = scalar_lea.vmem %s1, %s158
      // Predicated region
      $region25: #{inception_b_forward.9} parent=23 // pred_check
        %p160 = pneg %p70
      $region26: #{inception_b_forward.9} parent=23 // pred_check_branch
        %162 = sbr.rel (%p160) target = $region28
      $region27: #{inception_b_forward.9} parent=23 // pred_region
        _
      $region28: #{inception_b_forward.9} parent=23 // pred_fallthru
        _
    $region24: #{inception_b_forward.9} parent=5 // pred_fallthru
      _
    %p163 = scmp.le.s32.totalorder 2, %s7
    // Predicated region
    $region29: #{inception_b_forward.9} parent=5 // pred_check
      %p164 = pneg %p163
    $region30: #{inception_b_forward.9} parent=5 // pred_check_branch
      %166 = sbr.rel (%p164) target = $region32
    $region31: #{inception_b_forward.9} parent=5 // pred_region
      %s167 = ssub.s32 %s7, 2
      // Predicated region
      $region33: #{inception_b_forward.9} parent=31 // pred_check
        %p168 = pneg %p76
      $region34: #{inception_b_forward.9} parent=31 // pred_check_branch
        %170 = sbr.rel (%p168) target = $region36
      $region35: #{inception_b_forward.9} parent=31 // pred_region
        %p171 = scmp.lt.s32.totalorder %s18, 1
        %s172 = scalar_select %p171, %s18, 1
        %p173 = scmp.lt.s32.totalorder %s19, 0
        %s174 = scalar_select %p173, %s19, 0
        %s175 = sadd.s32 %s174, %s172
        %s176 = smul.addr %s175, 8
        %s177 = scalar_lea.vmem %s1, %s176
      $region36: #{inception_b_forward.9} parent=31 // pred_fallthru
        _
    $region32: #{inception_b_forward.9} parent=5 // pred_fallthru
      _
  $region6: #{inception_b_forward.9} parent=0 // loop_footer
    %s11 = sadd.s32 1, %s7
  $region7: #{inception_b_forward.9} parent=0 // loop_footer_branch
    %6 = sbr.rel target = $region3
  $region8: #{inception_b_forward.9} parent=0 // loop_exit
    _

// kernel: inception_b_forward.5
$region0: #{inception_b_forward.5}
  #allocation0 [shape = 'u32[]', space=smem, size = 0x4, offset = 0x4, fixed_abs, tag = 'smem constant byte address 0x4 - core index']
  #allocation1 [shape = 'u32[72,128]{1,0:T(1,128)}', space=vmem, size = 0x9000, scoped, tag = 'internal scratch']
  %s0 = inlined_call_operand.vmem [shape: bf16[2,17,8], index: 0, kind: input, shape index: {}]
  %s1 = inlined_call_operand.vmem [shape: bf16[2,8,384], index: 1, kind: input, shape index: {}]
  %s2 = inlined_call_operand.vmem [shape: f32[1,384], index: 2, kind: input, shape index: {}]
  %s3 = inlined_call_operand.vmem [shape: f32[2,16,384], index: 3, kind: output, shape index: {}]
  %s4 = sld [smem:[#allocation0]]
  $region45: #{inception_b_forward.5} parent=0
    _
  %s6 = ssub.s32 1, %s4
  %s7 = scalar_select 0, %s6, %s4
  loop: start=0, step=1, limit=4
  $region2: #{inception_b_forward.5} parent=0 // loop_pre_header
    _
  $region3: #{inception_b_forward.5} parent=0 // loop_header
    %s9 = sphi 0, %s13
    %p10 = scmp.ge.s32.totalorder %s9, 4
    %s16 = sphi 0, %s28
    %s17 = sphi 0, %s24
    %s18 = sphi 0, %s16
    %s19 = sphi 0, %s17
    %s20 = sphi 0, %s18
    %s21 = sphi 0, %s19
    %s31 = sphi 0, %s33
    %s34 = sphi 0, %s31
    %s35 = sphi 0, %s34
    %s51 = sphi 0, %s35
    %s55 = sphi 0, %s55
    %s57 = sphi 0, %s55
    %s58 = sphi 0, %s57
    %s72 = sphi 0, %s58
    %s76 = sphi 0, %s76
    %s78 = sphi 0, %s76
    %s79 = sphi 0, %s78
    %s93 = sphi 0, %s79
    %s101 = sphi 0, %s103
    %s104 = sphi 0, %s101
    %s105 = sphi 0, %s104
    %s121 = sphi 0, %s105
  $region4: #{inception_b_forward.5} parent=0 // loop_header_branch
    %12 = sbr.rel (%p10) target = $region8
  $region5: #{inception_b_forward.5} parent=0 // loop_body
    %s14 = ssub.s32 %s9, 1
    %s15 = ssub.s32 %s9, 2
    %s22 = sadd.s32 1, %s17
    %p23 = scmp.ge.s32.totalorder %s22, 1
    %s24 = scalar_select %p23, 0, %s22
    %s25 = sadd.s32 1, %s16
    %s26 = scalar_select %p23, %s25, %s16
    %p27 = scmp.ge.s32.totalorder %s26, 2
    %s28 = scalar_select %p27, 0, %s26
    %s29 = ssub.s32 %s16, %s28
    %p30 = scmp.eq.s32.totalorder %s29, 0
    %s32 = sadd.s32 %s31, 1
    %s33 = scalar_select %p30, %s31, %s32
    %p36 = pneg %p30
    %p37 = scmp.eq.s32.totalorder %s9, 1
    %p38 = por %p36, %p37
    %p39 = scmp.ne.s32.totalorder %s31, %s34
    %p40 = scmp.eq.s32.totalorder %s9, 0
    %p41 = por %p39, %p40
    %p42 = scmp.ne.s32.totalorder %s31, %s34
    %p43 = scmp.eq.s32.totalorder %s14, 1
    %p44 = por %p42, %p43
    %p45 = scmp.ne.s32.totalorder %s34, %s35
    %p46 = scmp.eq.s32.totalorder %s14, 0
    %p47 = por %p45, %p46
    %p48 = scmp.ne.s32.totalorder %s34, %s35
    %p49 = scmp.eq.s32.totalorder %s15, 1
    %p50 = por %p48, %p49
    %p52 = scmp.ne.s32.totalorder %s35, %s51
    %p53 = scmp.eq.s32.totalorder %s15, 0
    %p54 = por %p52, %p53
    %s56 = sadd.s32 %s55, 1
    %p59 = scmp.eq.s32.totalorder %s9, 1
    %p60 = scmp.ne.s32.totalorder %s55, %s57
    %p61 = scmp.eq.s32.totalorder %s9, 0
    %p62 = por %p60, %p61
    %p63 = scmp.ne.s32.totalorder %s55, %s57
    %p64 = scmp.eq.s32.totalorder %s14, 1
    %p65 = por %p63, %p64
    %p66 = scmp.ne.s32.totalorder %s57, %s58
    %p67 = scmp.eq.s32.totalorder %s14, 0
    %p68 = por %p66, %p67
    %p69 = scmp.ne.s32.totalorder %s57, %s58
    %p70 = scmp.eq.s32.totalorder %s15, 1
    %p71 = por %p69, %p70
    %p73 = scmp.ne.s32.totalorder %s58, %s72
    %p74 = scmp.eq.s32.totalorder %s15, 0
    %p75 = por %p73, %p74
    %s77 = sadd.s32 %s76, 1
    %p80 = scmp.eq.s32.totalorder %s9, 1
    %p81 = scmp.ne.s32.totalorder %s76, %s78
    %p82 = scmp.eq.s32.totalorder %s9, 0
    %p83 = por %p81, %p82
    %p84 = scmp.ne.s32.totalorder %s76, %s78
    %p85 = scmp.eq.s32.totalorder %s14, 1
    %p86 = por %p84, %p85
    %p87 = scmp.ne.s32.totalorder %s78, %s79
    %p88 = scmp.eq.s32.totalorder %s14, 0
    %p89 = por %p87, %p88
    %p90 = scmp.ne.s32.totalorder %s78, %s79
    %p91 = scmp.eq.s32.totalorder %s15, 1
    %p92 = por %p90, %p91
    %p94 = scmp.ne.s32.totalorder %s79, %s93
    %p95 = scmp.eq.s32.totalorder %s15, 0
    %p96 = por %p94, %p95
    %s97 = ssub.s32 %s16, %s28
    %s98 = ssub.s32 %s17, %s24
    %s99 = sor.u32 %s97, %s98
    %p100 = scmp.eq.s32.totalorder %s99, 0
    %s102 = sadd.s32 %s101, 1
    %s103 = scalar_select %p100, %s101, %s102
    %p106 = pneg %p100
    %p107 = scmp.eq.s32.totalorder %s9, 1
    %p108 = por %p106, %p107
    %p109 = scmp.ne.s32.totalorder %s101, %s104
    %p110 = scmp.eq.s32.totalorder %s9, 0
    %p111 = por %p109, %p110
    %p112 = scmp.ne.s32.totalorder %s101, %s104
    %p113 = scmp.eq.s32.totalorder %s14, 1
    %p114 = por %p112, %p113
    %p115 = scmp.ne.s32.totalorder %s104, %s105
    %p116 = scmp.eq.s32.totalorder %s14, 0
    %p117 = por %p115, %p116
    %p118 = scmp.ne.s32.totalorder %s104, %s105
    %p119 = scmp.eq.s32.totalorder %s15, 1
    %p120 = por %p118, %p119
    %p122 = scmp.ne.s32.totalorder %s105, %s121
    %p123 = scmp.eq.s32.totalorder %s15, 0
    %p124 = por %p122, %p123
    %p125 = scmp.le.s32.totalorder 1, %s9
    %p126 = scmp.lt.s32.totalorder %s9, 3
    %p127 = pnand %p125, %p126
    %p128 = pneg %p127
    // Predicated region
    $region9: #{inception_b_forward.5} parent=5 // pred_check
      _
    $region10: #{inception_b_forward.5} parent=5 // pred_check_branch
      %130 = sbr.rel (%p127) target = $region12
    $region11: #{inception_b_forward.5} parent=5 // pred_region
      %s131 = ssub.s32 %s9, 1
      // Predicated region
      $region13: #{inception_b_forward.5} parent=11 // pred_check
        %p132 = pneg %p68
      $region14: #{inception_b_forward.5} parent=11 // pred_check_branch
        %134 = sbr.rel (%p132) target = $region16
      $region15: #{inception_b_forward.5} parent=11 // pred_region
        _
      $region16: #{inception_b_forward.5} parent=11 // pred_fallthru
        _
      // Predicated region
      $region17: #{inception_b_forward.5} parent=11 // pred_check
        %p135 = pneg %p89
      $region18: #{inception_b_forward.5} parent=11 // pred_check_branch
        %137 = sbr.rel (%p135) target = $region20
      $region19: #{inception_b_forward.5} parent=11 // pred_region
        _
      $region20: #{inception_b_forward.5} parent=11 // pred_fallthru
        _
    $region12: #{inception_b_forward.5} parent=5 // pred_fallthru
      _
    %p138 = scmp.lt.s32.totalorder %s9, 2
    // Predicated region
    $region21: #{inception_b_forward.5} parent=5 // pred_check
      %p139 = pneg %p138
    $region22: #{inception_b_forward.5} parent=5 // pred_check_branch
      %141 = sbr.rel (%p139) target = $region24
    $region23: #{inception_b_forward.5} parent=5 // pred_region
      // Predicated region
      $region25: #{inception_b_forward.5} parent=23 // pred_check
        %p142 = pneg %p41
      $region26: #{inception_b_forward.5} parent=23 // pred_check_branch
        %144 = sbr.rel (%p142) target = $region28
      $region27: #{inception_b_forward.5} parent=23 // pred_region
        %p145 = scmp.lt.s32.totalorder %s16, 1
        %s146 = scalar_select %p145, %s16, 1
        %s147 = smul.addr %s146, 3
        %s148 = smul.addr %s147, 4
        %s149 = scalar_lea.vmem %s0, %s148
      $region28: #{inception_b_forward.5} parent=23 // pred_fallthru
        _
    $region24: #{inception_b_forward.5} parent=5 // pred_fallthru
      _
    %p150 = scmp.le.s32.totalorder 1, %s9
    %p151 = scmp.lt.s32.totalorder %s9, 3
    %p152 = pnand %p150, %p151
    %p153 = pneg %p152
    // Predicated region
    $region29: #{inception_b_forward.5} parent=5 // pred_check
      _
    $region30: #{inception_b_forward.5} parent=5 // pred_check_branch
      %155 = sbr.rel (%p152) target = $region32
    $region31: #{inception_b_forward.5} parent=5 // pred_region
      %s156 = ssub.s32 %s9, 1
      %p157 = scmp.lt.s32.totalorder %s18, 1
      %s158 = scalar_select %p157, %s18, 1
      %s159 = smul.addr %s158, 3
      %s160 = smul.addr %s159, 4
      %s161 = scalar_lea.vmem %s0, %s160
      %p162 = pneg %p47
      %p163 = pneg %p44
      %p164 = pneg %p68
      %p165 = pneg %p65
      %p166 = pneg %p89
      %p167 = pneg %p86
      %p168 = pneg %p117
      %p169 = pneg %p114
      %s170 = smul.u32 2, %s19
      %p171 = scmp.lt.s32.totalorder %s18, 1
      %s172 = scalar_select %p171, %s18, 1
      %p173 = scmp.lt.s32.totalorder %s170, 1
      %s174 = scalar_select %p173, %s170, 1
      %s175 = smul.addr %s174, 3
      %s176 = smul.addr %s172, 6
      %s177 = sadd.s32 %s175, %s176
      %s178 = smul.addr %s177, 8
      %s179 = scalar_lea.vmem %s3, %s178
      %p180 = scmp.lt.s32.totalorder %s18, 1
      %s181 = scalar_select %p180, %s18, 1
      %s182 = smul.addr %s181, 3
      %s183 = smul.addr %s182, 4
      %s184 = scalar_lea.vmem %s0, %s183
      %s185 = smul.u32 2, %s19
      %p186 = scmp.lt.s32.totalorder %s18, 1
      %s187 = scalar_select %p186, %s18, 1
      %p188 = scmp.lt.s32.totalorder %s185, 1
      %s189 = scalar_select %p188, %s185, 1
      %s190 = smul.addr %s189, 3
      %s191 = smul.addr %s187, 6
      %s192 = sadd.s32 %s190, %s191
      %s193 = smul.addr %s192, 8
      %s194 = scalar_lea.vmem %s3, %s193
      %s195 = smul.u32 2, %s19
      %s197 = smul.u32 %s19, 16
      %s198 = sshra.s32 %s197, 3
      %s199 = sand.u32 %s197, 7
      %s200 = smul.addr %s198, 4
      %s201 = scalar_lea.vmem %s184, %s200
      %v202 = vld [vmem:[%s201] sm:$0xf]
      %v203 = vld [vmem:[%s201 + $0x4] sm:$0xf]
      %v204 = vld [vmem:[%s201 + $0x8] sm:$0x1]
      %v205 = vunpack.c.l.bf16 %v202
      %v206 = vunpack.c.l.bf16 %v203
      %v207 = vunpack.c.l.bf16 %v204
      %v208 = vpack.c.bf16 %v206, %v205
      %v209 = vld [vmem:[%s1] sm:$0xff]
      %v210 = vld [vmem:[%s1 + $0x8] sm:$0xf]
      %v211 = vpack.c.bf16 %v207, %v207
      %s212 = scalar_lea.vmem %s1, 12
      %v213 = vld [vmem:[%s212] sm:$0xff]
      %v214 = vld [vmem:[%s212 + $0x8] sm:$0xf]
      %vm215 = vsmask.f32 7424
      %v217 = vshrl.u32 %v208, 16
      %v219 = vshll.u32 %v208, 16
      %v221 = vrot.slane %v219, 1
      %v222 = vor.u32 %v217, %v221
      %v224 = vshll.u32 %v211, 16
      %v226 = vrot.slane %v224, 1
      %v227 = vsel %vm215, %v222, %v226
      %v230 = vunpack.c.l.b16 %v213
      %v231 = vunpack.c.h.b16 %v213
      %v232 = vunpack.c.l.b16 %v214
      %v233 = vpack.c.b16 %v230, %v230
      %v234 = vpack.c.b16 %v231, %v231
      %v235 = vpack.c.b16 %v232, %v232
      %vm236 = vcmask 64512
      %v238 = vsel %vm236, %v227, 0
      %vm240 = vcmask 1043456
      %v242 = vsel %vm240, %v233, 0
      %v245 = vsel %vm240, %v234, 0
      %v248 = vsel %vm240, %v235, 0
      %250 = vmatpush.bf16.msra.mxu0 0
      %251 = vmatpush.bf16.msra.mxu0 0
      %252 = vmatpush.bf16.msra.mxu0 0
      %253 = vmatpush.bf16.msra.mxu0 0
      %254 = vmatpush.bf16.msra.mxu0 0
      %255 = vmatpush.bf16.msra.mxu0 0
      %256 = vmatpush.bf16.msra.mxu0 0
      %257 = vmatpush.bf16.msra.mxu0 %v242
      %258 = vmatmul.bf16.gmra.mxu0 %v238
      %v259 = vpop.f32.mrf.mxu0
      %v260 = vadd.f32 0.0, %v259
      %v261 = vpop.f32.mrf.mxu0
      %v262 = vadd.f32 0.0, %v261
      %263 = vdwg.mxu0
      %264 = vmatpush.bf16.msra.mxu0 0
      %265 = vmatpush.bf16.msra.mxu0 0
      %266 = vmatpush.bf16.msra.mxu0 0
      %267 = vmatpush.bf16.msra.mxu0 0
      %268 = vmatpush.bf16.msra.mxu0 0
      %269 = vmatpush.bf16.msra.mxu0 0
      %270 = vmatpush.bf16.msra.mxu0 0
      %271 = vmatpush.bf16.msra.mxu0 %v245
      %272 = vmatmul.bf16.gmra.mxu0 %v238
      %v273 = vpop.f32.mrf.mxu0
      %v274 = vadd.f32 0.0, %v273
      %v275 = vpop.f32.mrf.mxu0
      %v276 = vadd.f32 0.0, %v275
      %277 = vdwg.mxu0
      %278 = vmatpush.bf16.msra.mxu0 0
      %279 = vmatpush.bf16.msra.mxu0 0
      %280 = vmatpush.bf16.msra.mxu0 0
      %281 = vmatpush.bf16.msra.mxu0 0
      %282 = vmatpush.bf16.msra.mxu0 0
      %283 = vmatpush.bf16.msra.mxu0 0
      %284 = vmatpush.bf16.msra.mxu0 0
      %285 = vmatpush.bf16.msra.mxu0 %v248
      %286 = vmatmul.bf16.gmra.mxu0 %v238
      %v287 = vpop.f32.mrf.mxu0
      %v288 = vadd.f32 0.0, %v287
      %v289 = vpop.f32.mrf.mxu0
      %v290 = vadd.f32 0.0, %v289
      %291 = vdwg.mxu0
      %v294 = vunpack.c.l.b16 %v209
      %v295 = vunpack.c.h.b16 %v209
      %v296 = vunpack.c.l.b16 %v210
      %v297 = vpack.c.b16 %v294, %v294
      %v298 = vpack.c.b16 %v295, %v295
      %v299 = vpack.c.b16 %v296, %v296
      %v300 = vsel %vm236, %v208, 0
      %v303 = vsel %vm240, %v297, 0
      %v306 = vsel %vm240, %v298, 0
      %v309 = vsel %vm240, %v299, 0
      %311 = vmatpush.bf16.msra.mxu0 0
      %312 = vmatpush.bf16.msra.mxu0 0
      %313 = vmatpush.bf16.msra.mxu0 0
      %314 = vmatpush.bf16.msra.mxu0 0
      %315 = vmatpush.bf16.msra.mxu0 0
      %316 = vmatpush.bf16.msra.mxu0 0
      %317 = vmatpush.bf16.msra.mxu0 0
      %318 = vmatpush.bf16.msra.mxu0 %v303
      %319 = vmatmul.bf16.gmra.mxu0 %v300
      %v320 = vpop.f32.mrf.mxu0
      %v321 = vadd.f32 %v260, %v320
      %v322 = vpop.f32.mrf.mxu0
      %v323 = vadd.f32 %v262, %v322
      %324 = vdwg.mxu0
      %325 = vmatpush.bf16.msra.mxu0 0
      %326 = vmatpush.bf16.msra.mxu0 0
      %327 = vmatpush.bf16.msra.mxu0 0
      %328 = vmatpush.bf16.msra.mxu0 0
      %329 = vmatpush.bf16.msra.mxu0 0
      %330 = vmatpush.bf16.msra.mxu0 0
      %331 = vmatpush.bf16.msra.mxu0 0
      %332 = vmatpush.bf16.msra.mxu0 %v306
      %333 = vmatmul.bf16.gmra.mxu0 %v300
      %v334 = vpop.f32.mrf.mxu0
      %v335 = vadd.f32 %v274, %v334
      %v336 = vpop.f32.mrf.mxu0
      %v337 = vadd.f32 %v276, %v336
      %338 = vdwg.mxu0
      %339 = vmatpush.bf16.msra.mxu0 0
      %340 = vmatpush.bf16.msra.mxu0 0
      %341 = vmatpush.bf16.msra.mxu0 0
      %342 = vmatpush.bf16.msra.mxu0 0
      %343 = vmatpush.bf16.msra.mxu0 0
      %344 = vmatpush.bf16.msra.mxu0 0
      %345 = vmatpush.bf16.msra.mxu0 0
      %346 = vmatpush.bf16.msra.mxu0 %v309
      %347 = vmatmul.bf16.gmra.mxu0 %v300
      %v348 = vpop.f32.mrf.mxu0
      %v349 = vadd.f32 %v288, %v348
      %v350 = vpop.f32.mrf.mxu0
      %v351 = vadd.f32 %v290, %v350
      %352 = vdwg.mxu0
      %v353 = vld [vmem:[%s2] sm:$0x7]
      %v355 = vperm.slane %v353, 0
      %v356 = vperm.slane %v353, 1
      %v357 = vperm.slane %v353, 2
      %v361 = vadd.f32 %v321, %v355
      %v362 = vadd.f32 %v335, %v356
      %v363 = vadd.f32 %v349, %v357
      %v364 = vadd.f32 %v323, %v355
      %v365 = vadd.f32 %v337, %v356
      %v366 = vadd.f32 %v351, %v357
      %v367 = vmax.f32 %v361, 0.0
      %v368 = vmax.f32 %v362, 0.0
      %v369 = vmax.f32 %v363, 0.0
      %v370 = vmax.f32 %v364, 0.0
      %v371 = vmax.f32 %v365, 0.0
      %v372 = vmax.f32 %v366, 0.0
      %373 = vst [vmem:[%s194] sm:$0xff] %v367
      %374 = vst [vmem:[%s194 + $0x8] sm:$0xff] %v368
      %375 = vst [vmem:[%s194 + $0x10] sm:$0xff] %v369
      %376 = vst [vmem:[%s194 + $0x18] sm:$0xff] %v370
      %377 = vst [vmem:[%s194 + $0x20] sm:$0xff] %v371
      %378 = vst [vmem:[%s194 + $0x28] sm:$0xff] %v372
      %s379 = smul.u32 2, %s19
      %p380 = scmp.lt.s32.totalorder %s18, 1
      %s381 = scalar_select %p380, %s18, 1
      %p382 = scmp.lt.s32.totalorder %s379, 1
      %s383 = scalar_select %p382, %s379, 1
      %s384 = smul.addr %s383, 3
      %s385 = smul.addr %s381, 6
      %s386 = sadd.s32 %s384, %s385
      %s387 = smul.addr %s386, 8
      %s388 = scalar_lea.vmem %s3, %s387
      // Predicated region
      $region33: #{inception_b_forward.5} parent=31 // pred_check
        %p389 = pneg %p114
      $region34: #{inception_b_forward.5} parent=31 // pred_check_branch
        %391 = sbr.rel (%p389) target = $region36
      $region35: #{inception_b_forward.5} parent=31 // pred_region
        %s392 = smul.u32 2, %s19
      $region36: #{inception_b_forward.5} parent=31 // pred_fallthru
        _
    $region32: #{inception_b_forward.5} parent=5 // pred_fallthru
      _
    %p393 = scmp.le.s32.totalorder 2, %s9
    // Predicated region
    $region37: #{inception_b_forward.5} parent=5 // pred_check
      %p394 = pneg %p393
    $region38: #{inception_b_forward.5} parent=5 // pred_check_branch
      %396 = sbr.rel (%p394) target = $region40
    $region39: #{inception_b_forward.5} parent=5 // pred_region
      %s397 = ssub.s32 %s9, 2
      // Predicated region
      $region41: #{inception_b_forward.5} parent=39 // pred_check
        %p398 = pneg %p120
      $region42: #{inception_b_forward.5} parent=39 // pred_check_branch
        %400 = sbr.rel (%p398) target = $region44
      $region43: #{inception_b_forward.5} parent=39 // pred_region
        %s401 = smul.u32 2, %s21
        %p402 = scmp.lt.s32.totalorder %s20, 1
        %s403 = scalar_select %p402, %s20, 1
        %p404 = scmp.lt.s32.totalorder %s401, 1
        %s405 = scalar_select %p404, %s401, 1
        %s406 = smul.addr %s405, 3
        %s407 = smul.addr %s403, 6
        %s408 = sadd.s32 %s406, %s407
        %s409 = smul.addr %s408, 8
        %s410 = scalar_lea.vmem %s3, %s409
      $region44: #{inception_b_forward.5} parent=39 // pred_fallthru
        _
    $region40: #{inception_b_forward.5} parent=5 // pred_fallthru
      _
  $region6: #{inception_b_forward.5} parent=0 // loop_footer
    %s13 = sadd.s32 1, %s9
  $region7: #{inception_b_forward.5} parent=0 // loop_footer_branch
    %8 = sbr.rel target = $region3
  $region8: #{inception_b_forward.5} parent=0 // loop_exit
    _

</llo_original>
